<compile_context>
chip_gen: v7x
topology: tpu7x:2x2x1
jax: 0.10.0
libtpu: 0.0.40
codegen_flags: <defaults>
</compile_context>

<pallas_src>
import functools

import jax
import jax.numpy as jnp
from jax.experimental import pallas as pl
from jax.experimental.pallas import tpu as pltpu


def find_multiple(n: int, k: int) -> int:
    if n % k == 0:
        return n
    return n + k - n % k


# ---------------------------------------------------------------------------
# Fused Block kernel (one batch element per grid step)
# ---------------------------------------------------------------------------

def _block_kernel(x_ref, g1_ref, cos_ref, sin_ref, wqkv_ref, wproj_ref,
                  bproj_ref, g2_ref, w13_ref, w2_ref, o_ref,
                  *, num_heads, head_dim, eps, exact_softmax):
    # x_ref: (1, N, C) f32
    # cos/sin: (N, 2C) f32 pre-tiled tables  (sin is sign-folded: [-sin|+sin])
    # wqkv: (C, 3C) bf16  (q/k columns permuted per head into [even|odd] halves,
    #                      1/sqrt(hd) folded into the q columns)
    # wproj: (C, C) bf16; bproj/g1/g2: (1, C) f32
    # w13: (C, 2F) bf16 (= [w1 | w3]); w2: (F, C) bf16; o_ref: (1, N, C)
    H, hd = num_heads, head_dim
    hd2 = hd // 2
    cdt = wqkv_ref.dtype                                   # bf16 MXU operand dtype

    x = x_ref[0].astype(jnp.float32)                       # (N, C)
    C = x.shape[-1]
    F = w2_ref.shape[0]

    # ---- RMSNorm 1 -------------------------------------------------------
    ms = jnp.mean(x * x, axis=-1, keepdims=True)
    h1 = (x * jax.lax.rsqrt(ms + eps) * g1_ref[...]).astype(cdt)

    # ---- fused qkv projection (bf16 MXU, f32 accumulate) -----------------
    qkv = jnp.dot(h1, wqkv_ref[...],
                  preferred_element_type=jnp.float32)      # (N, 3C) f32

    # ---- slab-wide RoPE products over the whole q|k region ---------------
    # Per head the columns are [even | odd]; per head the tables are
    # cos: [cos|cos], sin: [-sin|+sin].  Two full-slab VPU multiplies cover
    # all heads of both q and k; the head loop below only slices and adds.
    qk = qkv[:, :2 * C]                                    # (N, 2C)
    qk_cos = qk * cos_ref[...]                             # [ e*cos | o*cos ]
    qk_sin = qk * sin_ref[...]                             # [-e*sin | o*sin ]

    wproj = wproj_ref[...]                                 # (C, C) bf16, loaded once

    # ---- per-head attention, output projection fused as k-tiled accum ----
    dn = (((1,), (1,)), ((), ()))                          # contract last dims
    acc = x + bproj_ref[...]                               # residual + proj bias (f32)
    for h in range(H):
        q_off, k_off, v_off = h * hd, C + h * hd, 2 * C + h * hd

        # Rotated halves (scale already folded into the q weight columns):
        #   new_even = e*cos - o*sin ; new_odd = o*cos + e*sin
        qre = (qk_cos[:, q_off:q_off + hd2] - qk_sin[:, q_off + hd2:q_off + hd]).astype(cdt)
        qro = (qk_cos[:, q_off + hd2:q_off + hd] - qk_sin[:, q_off:q_off + hd2]).astype(cdt)
        kre = (qk_cos[:, k_off:k_off + hd2] - qk_sin[:, k_off + hd2:k_off + hd]).astype(cdt)
        kro = (qk_cos[:, k_off + hd2:k_off + hd] - qk_sin[:, k_off:k_off + hd2]).astype(cdt)

        # q.k over the full head_dim == even-half dot + odd-half dot (no concat).
        s = (jax.lax.dot_general(qre, kre, dn, preferred_element_type=jnp.float32)
             + jax.lax.dot_general(qro, kro, dn, preferred_element_type=jnp.float32))

        # Numerically stable softmax; denominator reciprocal on the EUP.
        s = s - jnp.max(s, axis=-1, keepdims=True)
        p = jnp.exp(s)
        denom = jnp.sum(p, axis=-1, keepdims=True)
        if exact_softmax:
            p = p / denom
        else:
            p = p * pl.reciprocal(denom, approx=True)

        v_h = qkv[:, v_off:v_off + hd].astype(cdt)         # (N, hd), original order
        o_h = jnp.dot(p.astype(cdt), v_h,
                      preferred_element_type=jnp.float32)  # (N, hd) f32

        # Fused output projection: y += o_h @ Wproj[h*hd:(h+1)*hd, :]
        acc = acc + jnp.dot(o_h.astype(cdt), wproj[q_off:q_off + hd, :],
                            preferred_element_type=jnp.float32)

    y = acc                                                # (N, C) f32

    # ---- RMSNorm 2 + fused SwiGLU FFN + residual 2 ------------------------
    ms2 = jnp.mean(y * y, axis=-1, keepdims=True)
    h2 = (y * jax.lax.rsqrt(ms2 + eps) * g2_ref[...]).astype(cdt)

    ab = jnp.dot(h2, w13_ref[...], preferred_element_type=jnp.float32)  # (N, 2F)
    a, b = ab[:, :F], ab[:, F:]                            # lane-aligned (F % 128 == 0)
    z = (a * jax.nn.sigmoid(a) * b).astype(cdt)            # silu(a) * b
    ff = jnp.dot(z, w2_ref[...], preferred_element_type=jnp.float32)    # (N, C)

    o_ref[0] = (y + ff).astype(o_ref.dtype)


# ---------------------------------------------------------------------------
# Offline weight preparation
# ---------------------------------------------------------------------------

def permute_and_scale_qkv(w_qkv_t, num_heads, head_dim):
    """One-time column permutation of the (C, 3C) qkv weight: within each q and
    k head, even rotary components occupy the first hd/2 output columns and odd
    components the second half; 1/sqrt(head_dim) is folded into the q columns.
    v columns are untouched.
    NOTE: requires even head_dim; the result must only be consumed by the
    split-halves RoPE kernel above (not by a non-permuted code path)."""
    C = w_qkv_t.shape[0]
    assert head_dim % 2 == 0, "RoPE requires an even head_dim"
    assert C == num_heads * head_dim
    hd, hd2 = head_dim, head_dim // 2
    perm = jnp.concatenate([jnp.arange(0, hd, 2, dtype=jnp.int32),
                            jnp.arange(1, hd, 2, dtype=jnp.int32)])
    head_perm = (jnp.arange(num_heads, dtype=jnp.int32)[:, None] * hd
                 + perm[None, :]).reshape(-1)              # (C,)
    w_q = w_qkv_t[:, head_perm] * (head_dim ** -0.5)       # fold attention scale
    w_k = w_qkv_t[:, C + head_perm]
    w_v = w_qkv_t[:, 2 * C:]
    return jnp.concatenate([w_q, w_k, w_v], axis=1)


def prepare_kernel_params(w_qkv, w_proj, b_proj, g1, g2, w1, w3, w2, num_heads,
                          compute_dtype=jnp.bfloat16):
    """PyTorch nn.Linear weights are (out, in).  Transpose to (in, out),
    permute/scale the qkv weight for the split-halves RoPE, concatenate w1|w3,
    and cast the matmul weights to the MXU compute dtype (bf16)."""
    C = w_proj.shape[0]
    hd = C // num_heads
    w_qkv_t = w_qkv.T                                      # (C, 3C)
    return dict(
        g1=g1.reshape(1, C).astype(jnp.float32),
        g2=g2.reshape(1, C).astype(jnp.float32),
        bproj=b_proj.reshape(1, C).astype(jnp.float32),
        wqkv_rope=permute_and_scale_qkv(w_qkv_t, num_heads, hd).astype(compute_dtype),
        wproj=w_proj.T.astype(compute_dtype),              # (C, C)
        w13=jnp.concatenate([w1.T, w3.T], axis=1).astype(compute_dtype),  # (C, 2F)
        w2=w2.T.astype(compute_dtype),                     # (F, C)
    )


# ---------------------------------------------------------------------------
# Wrapper
# ---------------------------------------------------------------------------

def block_forward(x, freqs_cis, params, num_heads, exact_softmax=False):
    B, N, C = x.shape
    hd = C // num_heads

    # Host-side pre-tiled RoPE tables in the per-head split-halves layout,
    # covering the whole q|k region: cos -> [cos|cos], sin -> [-sin|+sin].
    cos = freqs_cis[..., 0].astype(jnp.float32)            # (N, hd/2)
    sin = freqs_cis[..., 1].astype(jnp.float32)
    cos_qk = jnp.tile(jnp.concatenate([cos, cos], axis=-1), (1, 2 * num_heads))   # (N, 2C)
    sin_qk = jnp.tile(jnp.concatenate([-sin, sin], axis=-1), (1, 2 * num_heads))  # (N, 2C)

    kernel = functools.partial(_block_kernel, num_heads=num_heads, head_dim=hd,
                               eps=1e-5, exact_softmax=exact_softmax)

    def resident(arr):
        # Weight / table blocks: constant index map -> stays resident in VMEM.
        nd = arr.ndim
        return pl.BlockSpec(arr.shape, lambda b, _n=nd: (0,) * _n)

    args = (x, params["g1"], cos_qk, sin_qk, params["wqkv_rope"],
            params["wproj"], params["bproj"], params["g2"],
            params["w13"], params["w2"])

    in_specs = ([pl.BlockSpec((1, N, C), lambda b: (b, 0, 0))]
                + [resident(a) for a in args[1:]])

    return pl.pallas_call(
        kernel,
        out_shape=jax.ShapeDtypeStruct((B, N, C), x.dtype),
        grid=(B,),
        in_specs=in_specs,
        out_specs=pl.BlockSpec((1, N, C), lambda b: (b, 0, 0)),
        compiler_params=pltpu.CompilerParams(
            dimension_semantics=("parallel",),
            vmem_limit_bytes=64 * 1024 * 1024),
    )(*args)


# ---------------------------------------------------------------------------
# Pure-JAX reference (mirrors the PyTorch Block forward exactly, f32)
# ---------------------------------------------------------------------------

def _apply_rotary_emb_ref(x, freqs_cis):
    # x: (B, N, H, hd); freqs_cis: (N, hd//2, 2)
    B, N, H, hd = x.shape
    xs = x.astype(jnp.float32).reshape(B, N, H, hd // 2, 2)
    f = freqs_cis.reshape(1, N, 1, hd // 2, 2)
    out = jnp.stack(
        [xs[..., 0] * f[..., 0] - xs[..., 1] * f[..., 1],
         xs[..., 1] * f[..., 0] + xs[..., 0] * f[..., 1]], axis=-1)
    return out.reshape(B, N, H, hd).astype(x.dtype)


def block_forward_ref(x, freqs_cis, w_qkv, w_proj, b_proj, g1, g2, w1, w3, w2,
                      num_heads):
    B, N, C = x.shape
    H = num_heads
    hd = C // H
    eps = 1e-5

    def rmsnorm(v, g):
        vf = v.astype(jnp.float32)
        out = vf * jax.lax.rsqrt(jnp.mean(vf * vf, axis=-1, keepdims=True) + eps)
        return out.astype(v.dtype) * g

    # Attention branch
    h = rmsnorm(x, g1)
    qkv = (h @ w_qkv.T).reshape(B, N, 3, H, hd).transpose(2, 0, 3, 1, 4)
    q, k, v = qkv[0], qkv[1], qkv[2]                       # (B, H, N, hd)
    q = _apply_rotary_emb_ref(q.transpose(0, 2, 1, 3), freqs_cis).transpose(0, 2, 1, 3)
    k = _apply_rotary_emb_ref(k.transpose(0, 2, 1, 3), freqs_cis).transpose(0, 2, 1, 3)
    s = jnp.einsum("bhqd,bhkd->bhqk", q, k) * (hd ** -0.5)
    p = jax.nn.softmax(s, axis=-1)
    o = jnp.einsum("bhqk,bhkd->bhqd", p, v)
    o = o.transpose(0, 2, 1, 3).reshape(B, N, C)
    y = o @ w_proj.T + b_proj + x

    # MLP branch
    h2 = rmsnorm(y, g2)
    ff = (jax.nn.silu(h2 @ w1.T) * (h2 @ w3.T)) @ w2.T
    return y + ff


# ---------------------------------------------------------------------------
# Main
# ---------------------------------------------------------------------------

if __name__ == "__main__":
    B, N, C = 2, 16, 64
    num_heads = 4
    head_dim = C // num_heads
    hidden = find_multiple(int(2 * (4 * C) / 3), 256)      # FeedForward hidden dim

    key = jax.random.PRNGKey(0)
    ks = jax.random.split(key, 9)

    x = jax.random.normal(ks[0], (B, N, C), dtype=jnp.float32)

    # Synthetic parameters (shapes from the nn.Module definitions, (out, in)).
    w_qkv = 0.05 * jax.random.normal(ks[1], (3 * C, C), dtype=jnp.float32)
    w_proj = 0.05 * jax.random.normal(ks[2], (C, C), dtype=jnp.float32)
    b_proj = 0.05 * jax.random.normal(ks[3], (C,), dtype=jnp.float32)
    g1 = 1.0 + 0.05 * jax.random.normal(ks[4], (C,), dtype=jnp.float32)
    g2 = 1.0 + 0.05 * jax.random.normal(ks[5], (C,), dtype=jnp.float32)
    w1 = 0.05 * jax.random.normal(ks[6], (hidden, C), dtype=jnp.float32)
    w3 = 0.05 * jax.random.normal(ks[7], (hidden, C), dtype=jnp.float32)
    w2 = 0.05 * jax.random.normal(ks[8], (C, hidden), dtype=jnp.float32)

    # freqs_cis: (N, head_dim//2, 2) == (cos, sin) per position / rotary pair.
    pos = jnp.arange(N, dtype=jnp.float32)[:, None]
    inv_freq = 1.0 / (10000.0 ** (jnp.arange(0, head_dim, 2, dtype=jnp.float32)
                                  / head_dim))
    angles = pos * inv_freq[None, :]                        # (N, head_dim//2)
    freqs_cis = jnp.stack([jnp.cos(angles), jnp.sin(angles)], axis=-1)

    params = prepare_kernel_params(w_qkv, w_proj, b_proj, g1, g2, w1, w3, w2,
                                   num_heads, compute_dtype=jnp.bfloat16)

    out = block_forward(x, freqs_cis, params, num_heads)
    out = jax.block_until_ready(out)

    ref = block_forward_ref(x, freqs_cis, w_qkv, w_proj, b_proj, g1, g2,
                            w1, w3, w2, num_heads)
    assert out.shape == (B, N, C)
    max_err = float(jnp.max(jnp.abs(out - ref)))
    # bf16 MXU operands + approx reciprocal vs f32 reference -> ~1e-3 level err.
    assert jnp.allclose(out, ref, atol=2e-2, rtol=2e-2), \
        f"mismatch vs. reference: max abs err {max_err}"

    print("KERNEL_OK")
</pallas_src>

<mosaic_0001>
module attributes {stable_mosaic.version = 11 : i64} {
  func.func @_block_kernel(%arg0: i32, %arg1: memref<1x16x64xf32, #tpu.memory_space<vmem>>, %arg2: memref<1x64xf32, #tpu.memory_space<vmem>>, %arg3: memref<16x128xf32, #tpu.memory_space<vmem>>, %arg4: memref<16x128xf32, #tpu.memory_space<vmem>>, %arg5: memref<64x192xbf16, #tpu.memory_space<vmem>>, %arg6: memref<64x64xbf16, #tpu.memory_space<vmem>>, %arg7: memref<1x64xf32, #tpu.memory_space<vmem>>, %arg8: memref<1x64xf32, #tpu.memory_space<vmem>>, %arg9: memref<64x512xbf16, #tpu.memory_space<vmem>>, %arg10: memref<256x64xbf16, #tpu.memory_space<vmem>>, %arg11: memref<1x16x64xf32, #tpu.memory_space<vmem>>) attributes {dimension_semantics = [#tpu.dimension_semantics<parallel>], iteration_bounds = array<i64: 2>, scalar_prefetch = 0 : i64, scratch_operands = 0 : i64, tpu.core_type = #tpu.core_type<tc>, window_params = [{transform_indices = @transform_0, window_bounds = array<i64: 1, 16, 64>}, {pipeline_mode = #tpu.pipeline_mode<synchronous>, transform_indices = @transform_1, window_bounds = array<i64: 1, 64>}, {pipeline_mode = #tpu.pipeline_mode<synchronous>, transform_indices = @transform_2, window_bounds = array<i64: 16, 128>}, {pipeline_mode = #tpu.pipeline_mode<synchronous>, transform_indices = @transform_3, window_bounds = array<i64: 16, 128>}, {pipeline_mode = #tpu.pipeline_mode<synchronous>, transform_indices = @transform_4, window_bounds = array<i64: 64, 192>}, {pipeline_mode = #tpu.pipeline_mode<synchronous>, transform_indices = @transform_5, window_bounds = array<i64: 64, 64>}, {pipeline_mode = #tpu.pipeline_mode<synchronous>, transform_indices = @transform_6, window_bounds = array<i64: 1, 64>}, {pipeline_mode = #tpu.pipeline_mode<synchronous>, transform_indices = @transform_7, window_bounds = array<i64: 1, 64>}, {pipeline_mode = #tpu.pipeline_mode<synchronous>, transform_indices = @transform_8, window_bounds = array<i64: 64, 512>}, {pipeline_mode = #tpu.pipeline_mode<synchronous>, transform_indices = @transform_9, window_bounds = array<i64: 256, 64>}, {transform_indices = @transform_10, window_bounds = array<i64: 1, 16, 64>}]} {
    %c0 = arith.constant 0 : index
    %c0_0 = arith.constant 0 : index
    %c0_1 = arith.constant 0 : index
    %0 = vector.load %arg1[%c0, %c0_0, %c0_1] : memref<1x16x64xf32, #tpu.memory_space<vmem>>, vector<1x16x64xf32>
    %1 = vector.shape_cast %0 : vector<1x16x64xf32> to vector<16x64xf32>
    %2 = arith.mulf %1, %1 : vector<16x64xf32>
    %cst = arith.constant dense<0.000000e+00> : vector<16xf32>
    %3 = vector.multi_reduction <add>, %2, %cst [1] : vector<16x64xf32> to vector<16xf32>
    %4 = vector.shape_cast %3 : vector<16xf32> to vector<16x1xf32>
    %cst_2 = arith.constant 6.400000e+01 : f32
    %5 = vector.broadcast %cst_2 : f32 to vector<16x1xf32>
    %6 = arith.divf %4, %5 : vector<16x1xf32>
    %cst_3 = arith.constant 9.99999974E-6 : f32
    %7 = vector.broadcast %cst_3 : f32 to vector<16x1xf32>
    %8 = arith.addf %6, %7 : vector<16x1xf32>
    %9 = math.rsqrt %8 : vector<16x1xf32>
    %10 = vector.broadcast %9 : vector<16x1xf32> to vector<16x64xf32>
    %11 = arith.mulf %1, %10 : vector<16x64xf32>
    %c0_4 = arith.constant 0 : index
    %c0_5 = arith.constant 0 : index
    %12 = vector.load %arg2[%c0_4, %c0_5] : memref<1x64xf32, #tpu.memory_space<vmem>>, vector<1x64xf32>
    %13 = vector.broadcast %12 : vector<1x64xf32> to vector<16x64xf32>
    %14 = arith.mulf %11, %13 : vector<16x64xf32>
    %15 = arith.truncf %14 : vector<16x64xf32> to vector<16x64xbf16>
    %c0_6 = arith.constant 0 : index
    %c0_7 = arith.constant 0 : index
    %16 = vector.load %arg5[%c0_6, %c0_7] : memref<64x192xbf16, #tpu.memory_space<vmem>>, vector<64x192xbf16>
    %cst_8 = arith.constant dense<0.000000e+00> : vector<16x192xf32>
    %17 = tpu.matmul %15, %16, %cst_8 {dimension_numbers = #tpu.dot_dimension_numbers<[1], [0], [0], [1], [0, 0, 1, 1], [], []>} : vector<16x64xbf16>, vector<64x192xbf16>, vector<16x192xf32> -> vector<16x192xf32>
    %18 = vector.extract_strided_slice %17 {offsets = [0, 0], sizes = [16, 128], strides = [1, 1]} : vector<16x192xf32> to vector<16x128xf32>
    %c0_9 = arith.constant 0 : index
    %c0_10 = arith.constant 0 : index
    %19 = vector.load %arg3[%c0_9, %c0_10] : memref<16x128xf32, #tpu.memory_space<vmem>>, vector<16x128xf32>
    %20 = arith.mulf %18, %19 : vector<16x128xf32>
    %c0_11 = arith.constant 0 : index
    %c0_12 = arith.constant 0 : index
    %21 = vector.load %arg4[%c0_11, %c0_12] : memref<16x128xf32, #tpu.memory_space<vmem>>, vector<16x128xf32>
    %22 = arith.mulf %18, %21 : vector<16x128xf32>
    %c0_13 = arith.constant 0 : index
    %c0_14 = arith.constant 0 : index
    %23 = vector.load %arg6[%c0_13, %c0_14] : memref<64x64xbf16, #tpu.memory_space<vmem>>, vector<64x64xbf16>
    %c0_15 = arith.constant 0 : index
    %c0_16 = arith.constant 0 : index
    %24 = vector.load %arg7[%c0_15, %c0_16] : memref<1x64xf32, #tpu.memory_space<vmem>>, vector<1x64xf32>
    %25 = vector.broadcast %24 : vector<1x64xf32> to vector<16x64xf32>
    %26 = arith.addf %1, %25 : vector<16x64xf32>
    %27 = vector.extract_strided_slice %20 {offsets = [0, 0], sizes = [16, 8], strides = [1, 1]} : vector<16x128xf32> to vector<16x8xf32>
    %28 = vector.extract_strided_slice %22 {offsets = [0, 8], sizes = [16, 8], strides = [1, 1]} : vector<16x128xf32> to vector<16x8xf32>
    %29 = arith.subf %27, %28 : vector<16x8xf32>
    %30 = arith.truncf %29 : vector<16x8xf32> to vector<16x8xbf16>
    %31 = vector.extract_strided_slice %20 {offsets = [0, 8], sizes = [16, 8], strides = [1, 1]} : vector<16x128xf32> to vector<16x8xf32>
    %32 = vector.extract_strided_slice %22 {offsets = [0, 0], sizes = [16, 8], strides = [1, 1]} : vector<16x128xf32> to vector<16x8xf32>
    %33 = arith.subf %31, %32 : vector<16x8xf32>
    %34 = arith.truncf %33 : vector<16x8xf32> to vector<16x8xbf16>
    %35 = vector.extract_strided_slice %20 {offsets = [0, 64], sizes = [16, 8], strides = [1, 1]} : vector<16x128xf32> to vector<16x8xf32>
    %36 = vector.extract_strided_slice %22 {offsets = [0, 72], sizes = [16, 8], strides = [1, 1]} : vector<16x128xf32> to vector<16x8xf32>
    %37 = arith.subf %35, %36 : vector<16x8xf32>
    %38 = arith.truncf %37 : vector<16x8xf32> to vector<16x8xbf16>
    %39 = vector.extract_strided_slice %20 {offsets = [0, 72], sizes = [16, 8], strides = [1, 1]} : vector<16x128xf32> to vector<16x8xf32>
    %40 = vector.extract_strided_slice %22 {offsets = [0, 64], sizes = [16, 8], strides = [1, 1]} : vector<16x128xf32> to vector<16x8xf32>
    %41 = arith.subf %39, %40 : vector<16x8xf32>
    %42 = arith.truncf %41 : vector<16x8xf32> to vector<16x8xbf16>
    %cst_17 = arith.constant dense<0.000000e+00> : vector<16x16xf32>
    %43 = tpu.matmul %30, %38, %cst_17 {dimension_numbers = #tpu.dot_dimension_numbers<[1], [1], [0], [0], [0, 0, 1, 0], [], []>} : vector<16x8xbf16>, vector<16x8xbf16>, vector<16x16xf32> -> vector<16x16xf32>
    %cst_18 = arith.constant dense<0.000000e+00> : vector<16x16xf32>
    %44 = tpu.matmul %34, %42, %cst_18 {dimension_numbers = #tpu.dot_dimension_numbers<[1], [1], [0], [0], [0, 0, 1, 0], [], []>} : vector<16x8xbf16>, vector<16x8xbf16>, vector<16x16xf32> -> vector<16x16xf32>
    %45 = arith.addf %43, %44 : vector<16x16xf32>
    %cst_19 = arith.constant dense<0xFF800000> : vector<16xf32>
    %46 = vector.multi_reduction <maximumf>, %45, %cst_19 [1] : vector<16x16xf32> to vector<16xf32>
    %47 = vector.shape_cast %46 : vector<16xf32> to vector<16x1xf32>
    %48 = vector.broadcast %47 : vector<16x1xf32> to vector<16x16xf32>
    %49 = arith.subf %45, %48 : vector<16x16xf32>
    %50 = math.exp %49 : vector<16x16xf32>
    %cst_20 = arith.constant dense<0.000000e+00> : vector<16xf32>
    %51 = vector.multi_reduction <add>, %50, %cst_20 [1] : vector<16x16xf32> to vector<16xf32>
    %52 = vector.shape_cast %51 : vector<16xf32> to vector<16x1xf32>
    %53 = tpu.reciprocal %52 {approx = true} : vector<16x1xf32> -> vector<16x1xf32>
    %54 = vector.broadcast %53 : vector<16x1xf32> to vector<16x16xf32>
    %55 = arith.mulf %50, %54 : vector<16x16xf32>
    %56 = vector.extract_strided_slice %17 {offsets = [0, 128], sizes = [16, 16], strides = [1, 1]} : vector<16x192xf32> to vector<16x16xf32>
    %57 = arith.truncf %56 : vector<16x16xf32> to vector<16x16xbf16>
    %58 = arith.truncf %55 : vector<16x16xf32> to vector<16x16xbf16>
    %cst_21 = arith.constant dense<0.000000e+00> : vector<16x16xf32>
    %59 = tpu.matmul %58, %57, %cst_21 {dimension_numbers = #tpu.dot_dimension_numbers<[1], [0], [0], [1], [0, 0, 1, 1], [], []>} : vector<16x16xbf16>, vector<16x16xbf16>, vector<16x16xf32> -> vector<16x16xf32>
    %60 = arith.truncf %59 : vector<16x16xf32> to vector<16x16xbf16>
    %61 = vector.extract_strided_slice %23 {offsets = [0, 0], sizes = [16, 64], strides = [1, 1]} : vector<64x64xbf16> to vector<16x64xbf16>
    %cst_22 = arith.constant dense<0.000000e+00> : vector<16x64xf32>
    %62 = tpu.matmul %60, %61, %cst_22 {dimension_numbers = #tpu.dot_dimension_numbers<[1], [0], [0], [1], [0, 0, 1, 1], [], []>} : vector<16x16xbf16>, vector<16x64xbf16>, vector<16x64xf32> -> vector<16x64xf32>
    %63 = arith.addf %26, %62 : vector<16x64xf32>
    %64 = vector.extract_strided_slice %20 {offsets = [0, 16], sizes = [16, 8], strides = [1, 1]} : vector<16x128xf32> to vector<16x8xf32>
    %65 = vector.extract_strided_slice %22 {offsets = [0, 24], sizes = [16, 8], strides = [1, 1]} : vector<16x128xf32> to vector<16x8xf32>
    %66 = arith.subf %64, %65 : vector<16x8xf32>
    %67 = arith.truncf %66 : vector<16x8xf32> to vector<16x8xbf16>
    %68 = vector.extract_strided_slice %20 {offsets = [0, 24], sizes = [16, 8], strides = [1, 1]} : vector<16x128xf32> to vector<16x8xf32>
    %69 = vector.extract_strided_slice %22 {offsets = [0, 16], sizes = [16, 8], strides = [1, 1]} : vector<16x128xf32> to vector<16x8xf32>
    %70 = arith.subf %68, %69 : vector<16x8xf32>
    %71 = arith.truncf %70 : vector<16x8xf32> to vector<16x8xbf16>
    %72 = vector.extract_strided_slice %20 {offsets = [0, 80], sizes = [16, 8], strides = [1, 1]} : vector<16x128xf32> to vector<16x8xf32>
    %73 = vector.extract_strided_slice %22 {offsets = [0, 88], sizes = [16, 8], strides = [1, 1]} : vector<16x128xf32> to vector<16x8xf32>
    %74 = arith.subf %72, %73 : vector<16x8xf32>
    %75 = arith.truncf %74 : vector<16x8xf32> to vector<16x8xbf16>
    %76 = vector.extract_strided_slice %20 {offsets = [0, 88], sizes = [16, 8], strides = [1, 1]} : vector<16x128xf32> to vector<16x8xf32>
    %77 = vector.extract_strided_slice %22 {offsets = [0, 80], sizes = [16, 8], strides = [1, 1]} : vector<16x128xf32> to vector<16x8xf32>
    %78 = arith.subf %76, %77 : vector<16x8xf32>
    %79 = arith.truncf %78 : vector<16x8xf32> to vector<16x8xbf16>
    %cst_23 = arith.constant dense<0.000000e+00> : vector<16x16xf32>
    %80 = tpu.matmul %67, %75, %cst_23 {dimension_numbers = #tpu.dot_dimension_numbers<[1], [1], [0], [0], [0, 0, 1, 0], [], []>} : vector<16x8xbf16>, vector<16x8xbf16>, vector<16x16xf32> -> vector<16x16xf32>
    %cst_24 = arith.constant dense<0.000000e+00> : vector<16x16xf32>
    %81 = tpu.matmul %71, %79, %cst_24 {dimension_numbers = #tpu.dot_dimension_numbers<[1], [1], [0], [0], [0, 0, 1, 0], [], []>} : vector<16x8xbf16>, vector<16x8xbf16>, vector<16x16xf32> -> vector<16x16xf32>
    %82 = arith.addf %80, %81 : vector<16x16xf32>
    %cst_25 = arith.constant dense<0xFF800000> : vector<16xf32>
    %83 = vector.multi_reduction <maximumf>, %82, %cst_25 [1] : vector<16x16xf32> to vector<16xf32>
    %84 = vector.shape_cast %83 : vector<16xf32> to vector<16x1xf32>
    %85 = vector.broadcast %84 : vector<16x1xf32> to vector<16x16xf32>
    %86 = arith.subf %82, %85 : vector<16x16xf32>
    %87 = math.exp %86 : vector<16x16xf32>
    %cst_26 = arith.constant dense<0.000000e+00> : vector<16xf32>
    %88 = vector.multi_reduction <add>, %87, %cst_26 [1] : vector<16x16xf32> to vector<16xf32>
    %89 = vector.shape_cast %88 : vector<16xf32> to vector<16x1xf32>
    %90 = tpu.reciprocal %89 {approx = true} : vector<16x1xf32> -> vector<16x1xf32>
    %91 = vector.broadcast %90 : vector<16x1xf32> to vector<16x16xf32>
    %92 = arith.mulf %87, %91 : vector<16x16xf32>
    %93 = vector.extract_strided_slice %17 {offsets = [0, 144], sizes = [16, 16], strides = [1, 1]} : vector<16x192xf32> to vector<16x16xf32>
    %94 = arith.truncf %93 : vector<16x16xf32> to vector<16x16xbf16>
    %95 = arith.truncf %92 : vector<16x16xf32> to vector<16x16xbf16>
    %cst_27 = arith.constant dense<0.000000e+00> : vector<16x16xf32>
    %96 = tpu.matmul %95, %94, %cst_27 {dimension_numbers = #tpu.dot_dimension_numbers<[1], [0], [0], [1], [0, 0, 1, 1], [], []>} : vector<16x16xbf16>, vector<16x16xbf16>, vector<16x16xf32> -> vector<16x16xf32>
    %97 = arith.truncf %96 : vector<16x16xf32> to vector<16x16xbf16>
    %98 = vector.extract_strided_slice %23 {offsets = [16, 0], sizes = [16, 64], strides = [1, 1]} : vector<64x64xbf16> to vector<16x64xbf16>
    %cst_28 = arith.constant dense<0.000000e+00> : vector<16x64xf32>
    %99 = tpu.matmul %97, %98, %cst_28 {dimension_numbers = #tpu.dot_dimension_numbers<[1], [0], [0], [1], [0, 0, 1, 1], [], []>} : vector<16x16xbf16>, vector<16x64xbf16>, vector<16x64xf32> -> vector<16x64xf32>
    %100 = arith.addf %63, %99 : vector<16x64xf32>
    %101 = vector.extract_strided_slice %20 {offsets = [0, 32], sizes = [16, 8], strides = [1, 1]} : vector<16x128xf32> to vector<16x8xf32>
    %102 = vector.extract_strided_slice %22 {offsets = [0, 40], sizes = [16, 8], strides = [1, 1]} : vector<16x128xf32> to vector<16x8xf32>
    %103 = arith.subf %101, %102 : vector<16x8xf32>
    %104 = arith.truncf %103 : vector<16x8xf32> to vector<16x8xbf16>
    %105 = vector.extract_strided_slice %20 {offsets = [0, 40], sizes = [16, 8], strides = [1, 1]} : vector<16x128xf32> to vector<16x8xf32>
    %106 = vector.extract_strided_slice %22 {offsets = [0, 32], sizes = [16, 8], strides = [1, 1]} : vector<16x128xf32> to vector<16x8xf32>
    %107 = arith.subf %105, %106 : vector<16x8xf32>
    %108 = arith.truncf %107 : vector<16x8xf32> to vector<16x8xbf16>
    %109 = vector.extract_strided_slice %20 {offsets = [0, 96], sizes = [16, 8], strides = [1, 1]} : vector<16x128xf32> to vector<16x8xf32>
    %110 = vector.extract_strided_slice %22 {offsets = [0, 104], sizes = [16, 8], strides = [1, 1]} : vector<16x128xf32> to vector<16x8xf32>
    %111 = arith.subf %109, %110 : vector<16x8xf32>
    %112 = arith.truncf %111 : vector<16x8xf32> to vector<16x8xbf16>
    %113 = vector.extract_strided_slice %20 {offsets = [0, 104], sizes = [16, 8], strides = [1, 1]} : vector<16x128xf32> to vector<16x8xf32>
    %114 = vector.extract_strided_slice %22 {offsets = [0, 96], sizes = [16, 8], strides = [1, 1]} : vector<16x128xf32> to vector<16x8xf32>
    %115 = arith.subf %113, %114 : vector<16x8xf32>
    %116 = arith.truncf %115 : vector<16x8xf32> to vector<16x8xbf16>
    %cst_29 = arith.constant dense<0.000000e+00> : vector<16x16xf32>
    %117 = tpu.matmul %104, %112, %cst_29 {dimension_numbers = #tpu.dot_dimension_numbers<[1], [1], [0], [0], [0, 0, 1, 0], [], []>} : vector<16x8xbf16>, vector<16x8xbf16>, vector<16x16xf32> -> vector<16x16xf32>
    %cst_30 = arith.constant dense<0.000000e+00> : vector<16x16xf32>
    %118 = tpu.matmul %108, %116, %cst_30 {dimension_numbers = #tpu.dot_dimension_numbers<[1], [1], [0], [0], [0, 0, 1, 0], [], []>} : vector<16x8xbf16>, vector<16x8xbf16>, vector<16x16xf32> -> vector<16x16xf32>
    %119 = arith.addf %117, %118 : vector<16x16xf32>
    %cst_31 = arith.constant dense<0xFF800000> : vector<16xf32>
    %120 = vector.multi_reduction <maximumf>, %119, %cst_31 [1] : vector<16x16xf32> to vector<16xf32>
    %121 = vector.shape_cast %120 : vector<16xf32> to vector<16x1xf32>
    %122 = vector.broadcast %121 : vector<16x1xf32> to vector<16x16xf32>
    %123 = arith.subf %119, %122 : vector<16x16xf32>
    %124 = math.exp %123 : vector<16x16xf32>
    %cst_32 = arith.constant dense<0.000000e+00> : vector<16xf32>
    %125 = vector.multi_reduction <add>, %124, %cst_32 [1] : vector<16x16xf32> to vector<16xf32>
    %126 = vector.shape_cast %125 : vector<16xf32> to vector<16x1xf32>
    %127 = tpu.reciprocal %126 {approx = true} : vector<16x1xf32> -> vector<16x1xf32>
    %128 = vector.broadcast %127 : vector<16x1xf32> to vector<16x16xf32>
    %129 = arith.mulf %124, %128 : vector<16x16xf32>
    %130 = vector.extract_strided_slice %17 {offsets = [0, 160], sizes = [16, 16], strides = [1, 1]} : vector<16x192xf32> to vector<16x16xf32>
    %131 = arith.truncf %130 : vector<16x16xf32> to vector<16x16xbf16>
    %132 = arith.truncf %129 : vector<16x16xf32> to vector<16x16xbf16>
    %cst_33 = arith.constant dense<0.000000e+00> : vector<16x16xf32>
    %133 = tpu.matmul %132, %131, %cst_33 {dimension_numbers = #tpu.dot_dimension_numbers<[1], [0], [0], [1], [0, 0, 1, 1], [], []>} : vector<16x16xbf16>, vector<16x16xbf16>, vector<16x16xf32> -> vector<16x16xf32>
    %134 = arith.truncf %133 : vector<16x16xf32> to vector<16x16xbf16>
    %135 = vector.extract_strided_slice %23 {offsets = [32, 0], sizes = [16, 64], strides = [1, 1]} : vector<64x64xbf16> to vector<16x64xbf16>
    %cst_34 = arith.constant dense<0.000000e+00> : vector<16x64xf32>
    %136 = tpu.matmul %134, %135, %cst_34 {dimension_numbers = #tpu.dot_dimension_numbers<[1], [0], [0], [1], [0, 0, 1, 1], [], []>} : vector<16x16xbf16>, vector<16x64xbf16>, vector<16x64xf32> -> vector<16x64xf32>
    %137 = arith.addf %100, %136 : vector<16x64xf32>
    %138 = vector.extract_strided_slice %20 {offsets = [0, 48], sizes = [16, 8], strides = [1, 1]} : vector<16x128xf32> to vector<16x8xf32>
    %139 = vector.extract_strided_slice %22 {offsets = [0, 56], sizes = [16, 8], strides = [1, 1]} : vector<16x128xf32> to vector<16x8xf32>
    %140 = arith.subf %138, %139 : vector<16x8xf32>
    %141 = arith.truncf %140 : vector<16x8xf32> to vector<16x8xbf16>
    %142 = vector.extract_strided_slice %20 {offsets = [0, 56], sizes = [16, 8], strides = [1, 1]} : vector<16x128xf32> to vector<16x8xf32>
    %143 = vector.extract_strided_slice %22 {offsets = [0, 48], sizes = [16, 8], strides = [1, 1]} : vector<16x128xf32> to vector<16x8xf32>
    %144 = arith.subf %142, %143 : vector<16x8xf32>
    %145 = arith.truncf %144 : vector<16x8xf32> to vector<16x8xbf16>
    %146 = vector.extract_strided_slice %20 {offsets = [0, 112], sizes = [16, 8], strides = [1, 1]} : vector<16x128xf32> to vector<16x8xf32>
    %147 = vector.extract_strided_slice %22 {offsets = [0, 120], sizes = [16, 8], strides = [1, 1]} : vector<16x128xf32> to vector<16x8xf32>
    %148 = arith.subf %146, %147 : vector<16x8xf32>
    %149 = arith.truncf %148 : vector<16x8xf32> to vector<16x8xbf16>
    %150 = vector.extract_strided_slice %20 {offsets = [0, 120], sizes = [16, 8], strides = [1, 1]} : vector<16x128xf32> to vector<16x8xf32>
    %151 = vector.extract_strided_slice %22 {offsets = [0, 112], sizes = [16, 8], strides = [1, 1]} : vector<16x128xf32> to vector<16x8xf32>
    %152 = arith.subf %150, %151 : vector<16x8xf32>
    %153 = arith.truncf %152 : vector<16x8xf32> to vector<16x8xbf16>
    %cst_35 = arith.constant dense<0.000000e+00> : vector<16x16xf32>
    %154 = tpu.matmul %141, %149, %cst_35 {dimension_numbers = #tpu.dot_dimension_numbers<[1], [1], [0], [0], [0, 0, 1, 0], [], []>} : vector<16x8xbf16>, vector<16x8xbf16>, vector<16x16xf32> -> vector<16x16xf32>
    %cst_36 = arith.constant dense<0.000000e+00> : vector<16x16xf32>
    %155 = tpu.matmul %145, %153, %cst_36 {dimension_numbers = #tpu.dot_dimension_numbers<[1], [1], [0], [0], [0, 0, 1, 0], [], []>} : vector<16x8xbf16>, vector<16x8xbf16>, vector<16x16xf32> -> vector<16x16xf32>
    %156 = arith.addf %154, %155 : vector<16x16xf32>
    %cst_37 = arith.constant dense<0xFF800000> : vector<16xf32>
    %157 = vector.multi_reduction <maximumf>, %156, %cst_37 [1] : vector<16x16xf32> to vector<16xf32>
    %158 = vector.shape_cast %157 : vector<16xf32> to vector<16x1xf32>
    %159 = vector.broadcast %158 : vector<16x1xf32> to vector<16x16xf32>
    %160 = arith.subf %156, %159 : vector<16x16xf32>
    %161 = math.exp %160 : vector<16x16xf32>
    %cst_38 = arith.constant dense<0.000000e+00> : vector<16xf32>
    %162 = vector.multi_reduction <add>, %161, %cst_38 [1] : vector<16x16xf32> to vector<16xf32>
    %163 = vector.shape_cast %162 : vector<16xf32> to vector<16x1xf32>
    %164 = tpu.reciprocal %163 {approx = true} : vector<16x1xf32> -> vector<16x1xf32>
    %165 = vector.broadcast %164 : vector<16x1xf32> to vector<16x16xf32>
    %166 = arith.mulf %161, %165 : vector<16x16xf32>
    %167 = vector.extract_strided_slice %17 {offsets = [0, 176], sizes = [16, 16], strides = [1, 1]} : vector<16x192xf32> to vector<16x16xf32>
    %168 = arith.truncf %167 : vector<16x16xf32> to vector<16x16xbf16>
    %169 = arith.truncf %166 : vector<16x16xf32> to vector<16x16xbf16>
    %cst_39 = arith.constant dense<0.000000e+00> : vector<16x16xf32>
    %170 = tpu.matmul %169, %168, %cst_39 {dimension_numbers = #tpu.dot_dimension_numbers<[1], [0], [0], [1], [0, 0, 1, 1], [], []>} : vector<16x16xbf16>, vector<16x16xbf16>, vector<16x16xf32> -> vector<16x16xf32>
    %171 = arith.truncf %170 : vector<16x16xf32> to vector<16x16xbf16>
    %172 = vector.extract_strided_slice %23 {offsets = [48, 0], sizes = [16, 64], strides = [1, 1]} : vector<64x64xbf16> to vector<16x64xbf16>
    %cst_40 = arith.constant dense<0.000000e+00> : vector<16x64xf32>
    %173 = tpu.matmul %171, %172, %cst_40 {dimension_numbers = #tpu.dot_dimension_numbers<[1], [0], [0], [1], [0, 0, 1, 1], [], []>} : vector<16x16xbf16>, vector<16x64xbf16>, vector<16x64xf32> -> vector<16x64xf32>
    %174 = arith.addf %137, %173 : vector<16x64xf32>
    %175 = arith.mulf %174, %174 : vector<16x64xf32>
    %cst_41 = arith.constant dense<0.000000e+00> : vector<16xf32>
    %176 = vector.multi_reduction <add>, %175, %cst_41 [1] : vector<16x64xf32> to vector<16xf32>
    %177 = vector.shape_cast %176 : vector<16xf32> to vector<16x1xf32>
    %cst_42 = arith.constant 6.400000e+01 : f32
    %178 = vector.broadcast %cst_42 : f32 to vector<16x1xf32>
    %179 = arith.divf %177, %178 : vector<16x1xf32>
    %cst_43 = arith.constant 9.99999974E-6 : f32
    %180 = vector.broadcast %cst_43 : f32 to vector<16x1xf32>
    %181 = arith.addf %179, %180 : vector<16x1xf32>
    %182 = math.rsqrt %181 : vector<16x1xf32>
    %183 = vector.broadcast %182 : vector<16x1xf32> to vector<16x64xf32>
    %184 = arith.mulf %174, %183 : vector<16x64xf32>
    %c0_44 = arith.constant 0 : index
    %c0_45 = arith.constant 0 : index
    %185 = vector.load %arg8[%c0_44, %c0_45] : memref<1x64xf32, #tpu.memory_space<vmem>>, vector<1x64xf32>
    %186 = vector.broadcast %185 : vector<1x64xf32> to vector<16x64xf32>
    %187 = arith.mulf %184, %186 : vector<16x64xf32>
    %188 = arith.truncf %187 : vector<16x64xf32> to vector<16x64xbf16>
    %c0_46 = arith.constant 0 : index
    %c0_47 = arith.constant 0 : index
    %189 = vector.load %arg9[%c0_46, %c0_47] : memref<64x512xbf16, #tpu.memory_space<vmem>>, vector<64x512xbf16>
    %cst_48 = arith.constant dense<0.000000e+00> : vector<16x512xf32>
    %190 = tpu.matmul %188, %189, %cst_48 {dimension_numbers = #tpu.dot_dimension_numbers<[1], [0], [0], [1], [0, 0, 1, 1], [], []>} : vector<16x64xbf16>, vector<64x512xbf16>, vector<16x512xf32> -> vector<16x512xf32>
    %191 = vector.extract_strided_slice %190 {offsets = [0, 0], sizes = [16, 256], strides = [1, 1]} : vector<16x512xf32> to vector<16x256xf32>
    %192 = vector.extract_strided_slice %190 {offsets = [0, 256], sizes = [16, 256], strides = [1, 1]} : vector<16x512xf32> to vector<16x256xf32>
    %193 = arith.negf %191 : vector<16x256xf32>
    %194 = math.exp %193 : vector<16x256xf32>
    %cst_49 = arith.constant 1.000000e+00 : f32
    %195 = vector.broadcast %cst_49 : f32 to vector<16x256xf32>
    %196 = arith.addf %195, %194 : vector<16x256xf32>
    %197 = arith.divf %195, %196 : vector<16x256xf32>
    %198 = arith.mulf %191, %197 : vector<16x256xf32>
    %199 = arith.mulf %198, %192 : vector<16x256xf32>
    %200 = arith.truncf %199 : vector<16x256xf32> to vector<16x256xbf16>
    %c0_50 = arith.constant 0 : index
    %c0_51 = arith.constant 0 : index
    %201 = vector.load %arg10[%c0_50, %c0_51] : memref<256x64xbf16, #tpu.memory_space<vmem>>, vector<256x64xbf16>
    %cst_52 = arith.constant dense<0.000000e+00> : vector<16x64xf32>
    %202 = tpu.matmul %200, %201, %cst_52 {dimension_numbers = #tpu.dot_dimension_numbers<[1], [0], [0], [1], [0, 0, 1, 1], [], []>} : vector<16x256xbf16>, vector<256x64xbf16>, vector<16x64xf32> -> vector<16x64xf32>
    %203 = arith.addf %174, %202 : vector<16x64xf32>
    %c0_53 = arith.constant 0 : index
    %c0_54 = arith.constant 0 : index
    %c0_55 = arith.constant 0 : index
    %204 = vector.load %arg11[%c0_53, %c0_54, %c0_55] : memref<1x16x64xf32, #tpu.memory_space<vmem>>, vector<1x16x64xf32>
    %205 = vector.shape_cast %204 : vector<1x16x64xf32> to vector<16x64xf32>
    %206 = vector.shape_cast %203 : vector<16x64xf32> to vector<1x16x64xf32>
    tpu.vector_store %arg11[%c0_53, %c0_54, %c0_55], %206 {strides = array<i32>} : memref<1x16x64xf32, #tpu.memory_space<vmem>>, vector<1x16x64xf32>,
    return
  }
  func.func @transform_0(%arg0: i32) -> (i32, i32, i32) {
    %c0_i32 = arith.constant 0 : i32
    %c0_i32_0 = arith.constant 0 : i32
    %c0_i32_1 = arith.constant 0 : i32
    return %arg0, %c0_i32, %c0_i32_0 : i32, i32, i32
  }
  func.func @transform_1(%arg0: i32) -> (i32, i32) {
    %c0_i32 = arith.constant 0 : i32
    %c0_i32_0 = arith.constant 0 : i32
    %c0_i32_1 = arith.constant 0 : i32
    return %c0_i32, %c0_i32_0 : i32, i32
  }
  func.func @transform_2(%arg0: i32) -> (i32, i32) {
    %c0_i32 = arith.constant 0 : i32
    %c0_i32_0 = arith.constant 0 : i32
    %c0_i32_1 = arith.constant 0 : i32
    return %c0_i32, %c0_i32_0 : i32, i32
  }
  func.func @transform_3(%arg0: i32) -> (i32, i32) {
    %c0_i32 = arith.constant 0 : i32
    %c0_i32_0 = arith.constant 0 : i32
    %c0_i32_1 = arith.constant 0 : i32
    return %c0_i32, %c0_i32_0 : i32, i32
  }
  func.func @transform_4(%arg0: i32) -> (i32, i32) {
    %c0_i32 = arith.constant 0 : i32
    %c0_i32_0 = arith.constant 0 : i32
    %c0_i32_1 = arith.constant 0 : i32
    return %c0_i32, %c0_i32_0 : i32, i32
  }
  func.func @transform_5(%arg0: i32) -> (i32, i32) {
    %c0_i32 = arith.constant 0 : i32
    %c0_i32_0 = arith.constant 0 : i32
    %c0_i32_1 = arith.constant 0 : i32
    return %c0_i32, %c0_i32_0 : i32, i32
  }
  func.func @transform_6(%arg0: i32) -> (i32, i32) {
    %c0_i32 = arith.constant 0 : i32
    %c0_i32_0 = arith.constant 0 : i32
    %c0_i32_1 = arith.constant 0 : i32
    return %c0_i32, %c0_i32_0 : i32, i32
  }
  func.func @transform_7(%arg0: i32) -> (i32, i32) {
    %c0_i32 = arith.constant 0 : i32
    %c0_i32_0 = arith.constant 0 : i32
    %c0_i32_1 = arith.constant 0 : i32
    return %c0_i32, %c0_i32_0 : i32, i32
  }
  func.func @transform_8(%arg0: i32) -> (i32, i32) {
    %c0_i32 = arith.constant 0 : i32
    %c0_i32_0 = arith.constant 0 : i32
    %c0_i32_1 = arith.constant 0 : i32
    return %c0_i32, %c0_i32_0 : i32, i32
  }
  func.func @transform_9(%arg0: i32) -> (i32, i32) {
    %c0_i32 = arith.constant 0 : i32
    %c0_i32_0 = arith.constant 0 : i32
    %c0_i32_1 = arith.constant 0 : i32
    return %c0_i32, %c0_i32_0 : i32, i32
  }
  func.func @transform_10(%arg0: i32) -> (i32, i32, i32) {
    %c0_i32 = arith.constant 0 : i32
    %c0_i32_0 = arith.constant 0 : i32
    %c0_i32_1 = arith.constant 0 : i32
    return %arg0, %c0_i32, %c0_i32_0 : i32, i32, i32
  }
}

</mosaic_0001>

<llo_original>
// kernel: tpu_custom_call.1
$region0: #{tpu_custom_call.1}
  #allocation0 [shape = 'u32[]', space=smem, size = 0x4, offset = 0x4, fixed_abs, tag = 'smem constant byte address 0x4 - core index']
  #allocation1 [shape = 'u32[144,128]{1,0:T(1,128)}', space=vmem, size = 0x12000, scoped, tag = 'internal scratch']
  %s0 = inlined_call_operand.hbm [shape: f32[2,16,64], index: 0, kind: input, shape index: {}]
  %s1 = inlined_call_operand.hbm [shape: f32[1,64], index: 1, kind: input, shape index: {}]
  %s2 = inlined_call_operand.hbm [shape: f32[16,128], index: 2, kind: input, shape index: {}]
  %s3 = inlined_call_operand.hbm [shape: f32[16,128], index: 3, kind: input, shape index: {}]
  %s4 = inlined_call_operand.hbm [shape: bf16[64,192], index: 4, kind: input, shape index: {}]
  %s5 = inlined_call_operand.hbm [shape: bf16[64,64], index: 5, kind: input, shape index: {}]
  %s6 = inlined_call_operand.hbm [shape: f32[1,64], index: 6, kind: input, shape index: {}]
  %s7 = inlined_call_operand.hbm [shape: f32[1,64], index: 7, kind: input, shape index: {}]
  %s8 = inlined_call_operand.hbm [shape: bf16[64,512], index: 8, kind: input, shape index: {}]
  %s9 = inlined_call_operand.hbm [shape: bf16[256,64], index: 9, kind: input, shape index: {}]
  %s10 = inlined_call_operand.hbm [shape: f32[2,16,64], index: 10, kind: output, shape index: {}]
  %s11 = sld [smem:[#allocation0]]
  $region113: #{tpu_custom_call.1} parent=0
    _
  %s13 = ssub.s32 1, %s11
  %s14 = scalar_select 0, %s13, %s11
  $region1: #{tpu_custom_call.1} parent=0
    #allocation2 [shape = 'u8[16384]{0}', space=vmem, size = 0x4000, scoped, tag = 'input window, operand 0']
    #allocation3 [shape = 's32[2]{0}', space=sflag, size = 0x8, scoped, tag = 'scoped memory for tpu_custom_call.1']
    #allocation4 [shape = 's32[2]{0}', space=sflag, size = 0x8, scoped, tag = 'scoped memory for tpu_custom_call.1']
    #allocation5 [shape = 'u8[512]{0}', space=vmem, size = 0x400, scoped, tag = 'input window, operand 1, single buffered']
    #allocation6 [shape = 's32[1]{0}', space=sflag, size = 0x4, scoped, tag = 'scoped memory for tpu_custom_call.1']
    #allocation7 [shape = 'u8[8192]{0}', space=vmem, size = 0x2000, scoped, tag = 'input window, operand 2, single buffered']
    #allocation8 [shape = 'u8[8192]{0}', space=vmem, size = 0x2000, scoped, tag = 'input window, operand 3, single buffered']
    #allocation9 [shape = 's32[1]{0}', space=sflag, size = 0x4, scoped, tag = 'scoped memory for tpu_custom_call.1']
    #allocation10 [shape = 'u8[32768]{0}', space=vmem, size = 0x8000, scoped, tag = 'input window, operand 4, single buffered']
    #allocation11 [shape = 'u8[16384]{0}', space=vmem, size = 0x4000, scoped, tag = 'input window, operand 5, single buffered']
    #allocation12 [shape = 's32[1]{0}', space=sflag, size = 0x4, scoped, tag = 'scoped memory for tpu_custom_call.1']
    #allocation13 [shape = 'u8[512]{0}', space=vmem, size = 0x400, scoped, tag = 'input window, operand 6, single buffered']
    #allocation14 [shape = 'u8[512]{0}', space=vmem, size = 0x400, scoped, tag = 'input window, operand 7, single buffered']
    #allocation15 [shape = 's32[1]{0}', space=sflag, size = 0x4, scoped, tag = 'scoped memory for tpu_custom_call.1']
    #allocation16 [shape = 'u8[65536]{0}', space=vmem, size = 0x10000, scoped, tag = 'input window, operand 8, single buffered']
    #allocation17 [shape = 'u8[65536]{0}', space=vmem, size = 0x10000, scoped, tag = 'input window, operand 9, single buffered']
    #allocation18 [shape = 's32[1]{0}', space=sflag, size = 0x4, scoped, tag = 'scoped memory for tpu_custom_call.1']
    #allocation19 [shape = 'u8[16384]{0}', space=vmem, size = 0x4000, scoped, tag = 'output window, operand 0']
    %15 = vsyncpa [#allocation3], 0
    %s16 = scalar_lea.sflag [#allocation3], 1
    %17 = vsyncpa %s16, 0
    %18 = vsyncpa [#allocation6], 0
    %19 = vsyncpa [#allocation9], 0
    %20 = vsyncpa [#allocation12], 0
    %21 = vsyncpa [#allocation15], 0
    %22 = vsyncpa [#allocation18], 0
    %23 = vsyncpa [#allocation4], 0
    %s24 = scalar_lea.sflag [#allocation4], 1
    %25 = vsyncpa %s24, 0
    loop: start=0, step=1, limit=4
    $region2: #{tpu_custom_call.1} parent=1 // loop_pre_header
      _
    $region3: #{tpu_custom_call.1} parent=1 // loop_header
      %s27 = sphi 0, %s31
      %p28 = scmp.ge.s32.totalorder %s27, 4
      %s37 = sphi 0, %s39
      %s40 = sphi 0, %s37
      %s41 = sphi 0, %s40
      %s57 = sphi 0, %s41
      %s61 = sphi 0, %s61
      %s63 = sphi 0, %s61
      %s64 = sphi 0, %s63
      %s78 = sphi 0, %s64
      %s82 = sphi 0, %s82
      %s84 = sphi 0, %s82
      %s85 = sphi 0, %s84
      %s99 = sphi 0, %s85
      %s103 = sphi 0, %s103
      %s105 = sphi 0, %s103
      %s106 = sphi 0, %s105
      %s120 = sphi 0, %s106
      %s124 = sphi 0, %s124
      %s126 = sphi 0, %s124
      %s127 = sphi 0, %s126
      %s141 = sphi 0, %s127
      %s145 = sphi 0, %s145
      %s147 = sphi 0, %s145
      %s148 = sphi 0, %s147
      %s162 = sphi 0, %s148
      %s166 = sphi 0, %s166
      %s168 = sphi 0, %s166
      %s169 = sphi 0, %s168
      %s183 = sphi 0, %s169
      %s187 = sphi 0, %s187
      %s189 = sphi 0, %s187
      %s190 = sphi 0, %s189
      %s204 = sphi 0, %s190
      %s208 = sphi 0, %s208
      %s210 = sphi 0, %s208
      %s211 = sphi 0, %s210
      %s225 = sphi 0, %s211
      %s229 = sphi 0, %s229
      %s231 = sphi 0, %s229
      %s232 = sphi 0, %s231
      %s246 = sphi 0, %s232
      %s252 = sphi 0, %s254
      %s255 = sphi 0, %s252
      %s256 = sphi 0, %s255
      %s272 = sphi 0, %s256
    $region4: #{tpu_custom_call.1} parent=1 // loop_header_branch
      %30 = sbr.rel (%p28) target = $region8
    $region5: #{tpu_custom_call.1} parent=1 // loop_body
      %s32 = ssub.s32 %s27, 1
      %s33 = ssub.s32 %s27, 2
      %s34 = sadd.s32 %s27, 1
      %s35 = ssub.s32 %s27, %s34
      %p36 = scmp.eq.s32.totalorder %s35, 0
      %s38 = sadd.s32 %s37, 1
      %s39 = scalar_select %p36, %s37, %s38
      %p42 = pneg %p36
      %p43 = scmp.eq.s32.totalorder %s27, 1
      %p44 = por %p42, %p43
      %p45 = scmp.ne.s32.totalorder %s37, %s40
      %p46 = scmp.eq.s32.totalorder %s27, 0
      %p47 = por %p45, %p46
      %p48 = scmp.ne.s32.totalorder %s37, %s40
      %p49 = scmp.eq.s32.totalorder %s32, 1
      %p50 = por %p48, %p49
      %p51 = scmp.ne.s32.totalorder %s40, %s41
      %p52 = scmp.eq.s32.totalorder %s32, 0
      %p53 = por %p51, %p52
      %p54 = scmp.ne.s32.totalorder %s40, %s41
      %p55 = scmp.eq.s32.totalorder %s33, 1
      %p56 = por %p54, %p55
      %p58 = scmp.ne.s32.totalorder %s41, %s57
      %p59 = scmp.eq.s32.totalorder %s33, 0
      %p60 = por %p58, %p59
      %s62 = sadd.s32 %s61, 1
      %p65 = scmp.eq.s32.totalorder %s27, 1
      %p66 = scmp.ne.s32.totalorder %s61, %s63
      %p67 = scmp.eq.s32.totalorder %s27, 0
      %p68 = por %p66, %p67
      %p69 = scmp.ne.s32.totalorder %s61, %s63
      %p70 = scmp.eq.s32.totalorder %s32, 1
      %p71 = por %p69, %p70
      %p72 = scmp.ne.s32.totalorder %s63, %s64
      %p73 = scmp.eq.s32.totalorder %s32, 0
      %p74 = por %p72, %p73
      %p75 = scmp.ne.s32.totalorder %s63, %s64
      %p76 = scmp.eq.s32.totalorder %s33, 1
      %p77 = por %p75, %p76
      %p79 = scmp.ne.s32.totalorder %s64, %s78
      %p80 = scmp.eq.s32.totalorder %s33, 0
      %p81 = por %p79, %p80
      %s83 = sadd.s32 %s82, 1
      %p86 = scmp.eq.s32.totalorder %s27, 1
      %p87 = scmp.ne.s32.totalorder %s82, %s84
      %p88 = scmp.eq.s32.totalorder %s27, 0
      %p89 = por %p87, %p88
      %p90 = scmp.ne.s32.totalorder %s82, %s84
      %p91 = scmp.eq.s32.totalorder %s32, 1
      %p92 = por %p90, %p91
      %p93 = scmp.ne.s32.totalorder %s84, %s85
      %p94 = scmp.eq.s32.totalorder %s32, 0
      %p95 = por %p93, %p94
      %p96 = scmp.ne.s32.totalorder %s84, %s85
      %p97 = scmp.eq.s32.totalorder %s33, 1
      %p98 = por %p96, %p97
      %p100 = scmp.ne.s32.totalorder %s85, %s99
      %p101 = scmp.eq.s32.totalorder %s33, 0
      %p102 = por %p100, %p101
      %s104 = sadd.s32 %s103, 1
      %p107 = scmp.eq.s32.totalorder %s27, 1
      %p108 = scmp.ne.s32.totalorder %s103, %s105
      %p109 = scmp.eq.s32.totalorder %s27, 0
      %p110 = por %p108, %p109
      %p111 = scmp.ne.s32.totalorder %s103, %s105
      %p112 = scmp.eq.s32.totalorder %s32, 1
      %p113 = por %p111, %p112
      %p114 = scmp.ne.s32.totalorder %s105, %s106
      %p115 = scmp.eq.s32.totalorder %s32, 0
      %p116 = por %p114, %p115
      %p117 = scmp.ne.s32.totalorder %s105, %s106
      %p118 = scmp.eq.s32.totalorder %s33, 1
      %p119 = por %p117, %p118
      %p121 = scmp.ne.s32.totalorder %s106, %s120
      %p122 = scmp.eq.s32.totalorder %s33, 0
      %p123 = por %p121, %p122
      %s125 = sadd.s32 %s124, 1
      %p128 = scmp.eq.s32.totalorder %s27, 1
      %p129 = scmp.ne.s32.totalorder %s124, %s126
      %p130 = scmp.eq.s32.totalorder %s27, 0
      %p131 = por %p129, %p130
      %p132 = scmp.ne.s32.totalorder %s124, %s126
      %p133 = scmp.eq.s32.totalorder %s32, 1
      %p134 = por %p132, %p133
      %p135 = scmp.ne.s32.totalorder %s126, %s127
      %p136 = scmp.eq.s32.totalorder %s32, 0
      %p137 = por %p135, %p136
      %p138 = scmp.ne.s32.totalorder %s126, %s127
      %p139 = scmp.eq.s32.totalorder %s33, 1
      %p140 = por %p138, %p139
      %p142 = scmp.ne.s32.totalorder %s127, %s141
      %p143 = scmp.eq.s32.totalorder %s33, 0
      %p144 = por %p142, %p143
      %s146 = sadd.s32 %s145, 1
      %p149 = scmp.eq.s32.totalorder %s27, 1
      %p150 = scmp.ne.s32.totalorder %s145, %s147
      %p151 = scmp.eq.s32.totalorder %s27, 0
      %p152 = por %p150, %p151
      %p153 = scmp.ne.s32.totalorder %s145, %s147
      %p154 = scmp.eq.s32.totalorder %s32, 1
      %p155 = por %p153, %p154
      %p156 = scmp.ne.s32.totalorder %s147, %s148
      %p157 = scmp.eq.s32.totalorder %s32, 0
      %p158 = por %p156, %p157
      %p159 = scmp.ne.s32.totalorder %s147, %s148
      %p160 = scmp.eq.s32.totalorder %s33, 1
      %p161 = por %p159, %p160
      %p163 = scmp.ne.s32.totalorder %s148, %s162
      %p164 = scmp.eq.s32.totalorder %s33, 0
      %p165 = por %p163, %p164
      %s167 = sadd.s32 %s166, 1
      %p170 = scmp.eq.s32.totalorder %s27, 1
      %p171 = scmp.ne.s32.totalorder %s166, %s168
      %p172 = scmp.eq.s32.totalorder %s27, 0
      %p173 = por %p171, %p172
      %p174 = scmp.ne.s32.totalorder %s166, %s168
      %p175 = scmp.eq.s32.totalorder %s32, 1
      %p176 = por %p174, %p175
      %p177 = scmp.ne.s32.totalorder %s168, %s169
      %p178 = scmp.eq.s32.totalorder %s32, 0
      %p179 = por %p177, %p178
      %p180 = scmp.ne.s32.totalorder %s168, %s169
      %p181 = scmp.eq.s32.totalorder %s33, 1
      %p182 = por %p180, %p181
      %p184 = scmp.ne.s32.totalorder %s169, %s183
      %p185 = scmp.eq.s32.totalorder %s33, 0
      %p186 = por %p184, %p185
      %s188 = sadd.s32 %s187, 1
      %p191 = scmp.eq.s32.totalorder %s27, 1
      %p192 = scmp.ne.s32.totalorder %s187, %s189
      %p193 = scmp.eq.s32.totalorder %s27, 0
      %p194 = por %p192, %p193
      %p195 = scmp.ne.s32.totalorder %s187, %s189
      %p196 = scmp.eq.s32.totalorder %s32, 1
      %p197 = por %p195, %p196
      %p198 = scmp.ne.s32.totalorder %s189, %s190
      %p199 = scmp.eq.s32.totalorder %s32, 0
      %p200 = por %p198, %p199
      %p201 = scmp.ne.s32.totalorder %s189, %s190
      %p202 = scmp.eq.s32.totalorder %s33, 1
      %p203 = por %p201, %p202
      %p205 = scmp.ne.s32.totalorder %s190, %s204
      %p206 = scmp.eq.s32.totalorder %s33, 0
      %p207 = por %p205, %p206
      %s209 = sadd.s32 %s208, 1
      %p212 = scmp.eq.s32.totalorder %s27, 1
      %p213 = scmp.ne.s32.totalorder %s208, %s210
      %p214 = scmp.eq.s32.totalorder %s27, 0
      %p215 = por %p213, %p214
      %p216 = scmp.ne.s32.totalorder %s208, %s210
      %p217 = scmp.eq.s32.totalorder %s32, 1
      %p218 = por %p216, %p217
      %p219 = scmp.ne.s32.totalorder %s210, %s211
      %p220 = scmp.eq.s32.totalorder %s32, 0
      %p221 = por %p219, %p220
      %p222 = scmp.ne.s32.totalorder %s210, %s211
      %p223 = scmp.eq.s32.totalorder %s33, 1
      %p224 = por %p222, %p223
      %p226 = scmp.ne.s32.totalorder %s211, %s225
      %p227 = scmp.eq.s32.totalorder %s33, 0
      %p228 = por %p226, %p227
      %s230 = sadd.s32 %s229, 1
      %p233 = scmp.eq.s32.totalorder %s27, 1
      %p234 = scmp.ne.s32.totalorder %s229, %s231
      %p235 = scmp.eq.s32.totalorder %s27, 0
      %p236 = por %p234, %p235
      %p237 = scmp.ne.s32.totalorder %s229, %s231
      %p238 = scmp.eq.s32.totalorder %s32, 1
      %p239 = por %p237, %p238
      %p240 = scmp.ne.s32.totalorder %s231, %s232
      %p241 = scmp.eq.s32.totalorder %s32, 0
      %p242 = por %p240, %p241
      %p243 = scmp.ne.s32.totalorder %s231, %s232
      %p244 = scmp.eq.s32.totalorder %s33, 1
      %p245 = por %p243, %p244
      %p247 = scmp.ne.s32.totalorder %s232, %s246
      %p248 = scmp.eq.s32.totalorder %s33, 0
      %p249 = por %p247, %p248
      %s250 = ssub.s32 %s27, %s34
      %p251 = scmp.eq.s32.totalorder %s250, 0
      %s253 = sadd.s32 %s252, 1
      %s254 = scalar_select %p251, %s252, %s253
      %p257 = pneg %p251
      %p258 = scmp.eq.s32.totalorder %s27, 1
      %p259 = por %p257, %p258
      %p260 = scmp.ne.s32.totalorder %s252, %s255
      %p261 = scmp.eq.s32.totalorder %s27, 0
      %p262 = por %p260, %p261
      %p263 = scmp.ne.s32.totalorder %s252, %s255
      %p264 = scmp.eq.s32.totalorder %s32, 1
      %p265 = por %p263, %p264
      %p266 = scmp.ne.s32.totalorder %s255, %s256
      %p267 = scmp.eq.s32.totalorder %s32, 0
      %p268 = por %p266, %p267
      %p269 = scmp.ne.s32.totalorder %s255, %s256
      %p270 = scmp.eq.s32.totalorder %s33, 1
      %p271 = por %p269, %p270
      %p273 = scmp.ne.s32.totalorder %s256, %s272
      %p274 = scmp.eq.s32.totalorder %s33, 0
      %p275 = por %p273, %p274
      %p276 = scmp.le.s32.totalorder 1, %s27
      %p277 = scmp.lt.s32.totalorder %s27, 3
      %p278 = pnand %p276, %p277
      %p279 = pneg %p278
      // Predicated region
      $region9: #{tpu_custom_call.1} parent=5 // pred_check
        _
      $region10: #{tpu_custom_call.1} parent=5 // pred_check_branch
        %281 = sbr.rel (%p278) target = $region12
      $region11: #{tpu_custom_call.1} parent=5 // pred_region
        %s282 = ssub.s32 %s27, 1
        // Predicated region
        $region13: #{tpu_custom_call.1} parent=11 // pred_check
          %p283 = pneg %p74
        $region14: #{tpu_custom_call.1} parent=11 // pred_check_branch
          %285 = sbr.rel (%p283) target = $region16
        $region15: #{tpu_custom_call.1} parent=11 // pred_region
          %s287 = ssub.s32 16, 16
          %288 = vsyncadd [#allocation6], %s287
          %s290 = sshll.u32 [#allocation5], 4
          %s291 = int_to_ptr.vmem [resolvable:$true] %s290
          %293 = dma.hbm_to_vmem [thread:$0]  %s1, 16, %s291, [#allocation6]
        $region16: #{tpu_custom_call.1} parent=11 // pred_fallthru
          _
        // Predicated region
        $region17: #{tpu_custom_call.1} parent=11 // pred_check
          %p294 = pneg %p95
        $region18: #{tpu_custom_call.1} parent=11 // pred_check_branch
          %296 = sbr.rel (%p294) target = $region20
        $region19: #{tpu_custom_call.1} parent=11 // pred_region
          %s298 = ssub.s32 256, 256
          %299 = vsyncadd [#allocation6], %s298
          %s300 = sshll.u32 [#allocation7], 4
          %s301 = int_to_ptr.vmem [resolvable:$true] %s300
          %306 = dma.hbm_to_vmem [thread:$0]  %s2, 256, %s301, [#allocation6], 128, 128, 8
        $region20: #{tpu_custom_call.1} parent=11 // pred_fallthru
          _
        // Predicated region
        $region21: #{tpu_custom_call.1} parent=11 // pred_check
          %p307 = pneg %p116
        $region22: #{tpu_custom_call.1} parent=11 // pred_check_branch
          %309 = sbr.rel (%p307) target = $region24
        $region23: #{tpu_custom_call.1} parent=11 // pred_region
          %s311 = ssub.s32 256, 256
          %312 = vsyncadd [#allocation9], %s311
          %s313 = sshll.u32 [#allocation8], 4
          %s314 = int_to_ptr.vmem [resolvable:$true] %s313
          %319 = dma.hbm_to_vmem [thread:$0]  %s3, 256, %s314, [#allocation9], 128, 128, 8
        $region24: #{tpu_custom_call.1} parent=11 // pred_fallthru
          _
        // Predicated region
        $region25: #{tpu_custom_call.1} parent=11 // pred_check
          %p320 = pneg %p137
        $region26: #{tpu_custom_call.1} parent=11 // pred_check_branch
          %322 = sbr.rel (%p320) target = $region28
        $region27: #{tpu_custom_call.1} parent=11 // pred_region
          %s324 = ssub.s32 1024, 1024
          %325 = vsyncadd [#allocation9], %s324
          %s326 = sshll.u32 [#allocation10], 4
          %s327 = int_to_ptr.vmem [resolvable:$true] %s326
          %332 = dma.hbm_to_vmem [thread:$0]  %s4, 1024, %s327, [#allocation9], 128, 128, 8
        $region28: #{tpu_custom_call.1} parent=11 // pred_fallthru
          _
        // Predicated region
        $region29: #{tpu_custom_call.1} parent=11 // pred_check
          %p333 = pneg %p158
        $region30: #{tpu_custom_call.1} parent=11 // pred_check_branch
          %335 = sbr.rel (%p333) target = $region32
        $region31: #{tpu_custom_call.1} parent=11 // pred_region
          %s337 = ssub.s32 512, 512
          %338 = vsyncadd [#allocation12], %s337
          %s339 = sshll.u32 [#allocation11], 4
          %s340 = int_to_ptr.vmem [resolvable:$true] %s339
          %345 = dma.hbm_to_vmem [thread:$0]  %s5, 512, %s340, [#allocation12], 64, 64, 4
        $region32: #{tpu_custom_call.1} parent=11 // pred_fallthru
          _
        // Predicated region
        $region33: #{tpu_custom_call.1} parent=11 // pred_check
          %p346 = pneg %p179
        $region34: #{tpu_custom_call.1} parent=11 // pred_check_branch
          %348 = sbr.rel (%p346) target = $region36
        $region35: #{tpu_custom_call.1} parent=11 // pred_region
          %s350 = ssub.s32 16, 16
          %351 = vsyncadd [#allocation12], %s350
          %s353 = sshll.u32 [#allocation13], 4
          %s354 = int_to_ptr.vmem [resolvable:$true] %s353
          %356 = dma.hbm_to_vmem [thread:$0]  %s6, 16, %s354, [#allocation12]
        $region36: #{tpu_custom_call.1} parent=11 // pred_fallthru
          _
        // Predicated region
        $region37: #{tpu_custom_call.1} parent=11 // pred_check
          %p357 = pneg %p200
        $region38: #{tpu_custom_call.1} parent=11 // pred_check_branch
          %359 = sbr.rel (%p357) target = $region40
        $region39: #{tpu_custom_call.1} parent=11 // pred_region
          %s361 = ssub.s32 16, 16
          %362 = vsyncadd [#allocation15], %s361
          %s364 = sshll.u32 [#allocation14], 4
          %s365 = int_to_ptr.vmem [resolvable:$true] %s364
          %367 = dma.hbm_to_vmem [thread:$0]  %s7, 16, %s365, [#allocation15]
        $region40: #{tpu_custom_call.1} parent=11 // pred_fallthru
          _
        // Predicated region
        $region41: #{tpu_custom_call.1} parent=11 // pred_check
          %p368 = pneg %p221
        $region42: #{tpu_custom_call.1} parent=11 // pred_check_branch
          %370 = sbr.rel (%p368) target = $region44
        $region43: #{tpu_custom_call.1} parent=11 // pred_region
          %s372 = ssub.s32 2048, 2048
          %373 = vsyncadd [#allocation15], %s372
          %s374 = sshll.u32 [#allocation16], 4
          %s375 = int_to_ptr.vmem [resolvable:$true] %s374
          %380 = dma.hbm_to_vmem [thread:$0]  %s8, 2048, %s375, [#allocation15], 256, 256, 16
        $region44: #{tpu_custom_call.1} parent=11 // pred_fallthru
          _
        // Predicated region
        $region45: #{tpu_custom_call.1} parent=11 // pred_check
          %p381 = pneg %p242
        $region46: #{tpu_custom_call.1} parent=11 // pred_check_branch
          %383 = sbr.rel (%p381) target = $region48
        $region47: #{tpu_custom_call.1} parent=11 // pred_region
          %s385 = ssub.s32 2048, 2048
          %386 = vsyncadd [#allocation18], %s385
          %s387 = sshll.u32 [#allocation17], 4
          %s388 = int_to_ptr.vmem [resolvable:$true] %s387
          %393 = dma.hbm_to_vmem [thread:$0]  %s9, 2048, %s388, [#allocation18], 64, 64, 4
        $region48: #{tpu_custom_call.1} parent=11 // pred_fallthru
          _
      $region12: #{tpu_custom_call.1} parent=5 // pred_fallthru
        _
      %p394 = scmp.lt.s32.totalorder %s27, 2
      // Predicated region
      $region49: #{tpu_custom_call.1} parent=5 // pred_check
        %p395 = pneg %p394
      $region50: #{tpu_custom_call.1} parent=5 // pred_check_branch
        %397 = sbr.rel (%p395) target = $region52
      $region51: #{tpu_custom_call.1} parent=5 // pred_region
        // Predicated region
        $region53: #{tpu_custom_call.1} parent=51 // pred_check
          %p398 = pneg %p47
        $region54: #{tpu_custom_call.1} parent=51 // pred_check_branch
          %400 = sbr.rel (%p398) target = $region56
        $region55: #{tpu_custom_call.1} parent=51 // pred_region
          %s401 = sand.u32 %s37, 1
          %s402 = scalar_lea.sflag [#allocation3], %s401
          %s403 = sand.u32 %s37, 1
          %s404 = smul.addr %s403, 16
          %s405 = scalar_lea.vmem [#allocation2], %s404
          %s407 = ssub.s32 256, 256
          %408 = vsyncadd %s402, %s407
          %s409 = smul.addr %s27, 2
          %s410 = smul.addr %s409, 128
          %s411 = scalar_lea.hbm %s0, %s410
          %s412 = sshll.u32 %s405, 4
          %s413 = int_to_ptr.vmem [resolvable:$true] %s412
          %418 = dma.hbm_to_vmem [thread:$0]  %s411, 256, %s413, %s402, 128, 128, 8
        $region56: #{tpu_custom_call.1} parent=51 // pred_fallthru
          _
      $region52: #{tpu_custom_call.1} parent=5 // pred_fallthru
        _
      %p419 = scmp.le.s32.totalorder 1, %s27
      %p420 = scmp.lt.s32.totalorder %s27, 3
      %p421 = pnand %p419, %p420
      %p422 = pneg %p421
      // Predicated region
      $region57: #{tpu_custom_call.1} parent=5 // pred_check
        _
      $region58: #{tpu_custom_call.1} parent=5 // pred_check_branch
        %424 = sbr.rel (%p421) target = $region60
      $region59: #{tpu_custom_call.1} parent=5 // pred_region
        %s425 = ssub.s32 %s27, 1
        %s426 = sand.u32 %s40, 1
        %s427 = scalar_lea.sflag [#allocation3], %s426
        %s428 = sand.u32 %s40, 1
        %s429 = smul.addr %s428, 16
        %s430 = scalar_lea.vmem [#allocation2], %s429
        // Predicated region
        $region61: #{tpu_custom_call.1} parent=59 // pred_check
          %p431 = pneg %p53
        $region62: #{tpu_custom_call.1} parent=59 // pred_check_branch
          %433 = sbr.rel (%p431) target = $region64
        $region63: #{tpu_custom_call.1} parent=59 // pred_region
          %434 = dma.done %s427, 256
        $region64: #{tpu_custom_call.1} parent=59 // pred_fallthru
          _
        // Predicated region
        $region65: #{tpu_custom_call.1} parent=59 // pred_check
          %p435 = pneg %p74
        $region66: #{tpu_custom_call.1} parent=59 // pred_check_branch
          %437 = sbr.rel (%p435) target = $region68
        $region67: #{tpu_custom_call.1} parent=59 // pred_region
          %438 = dma.done [#allocation6], 16
        $region68: #{tpu_custom_call.1} parent=59 // pred_fallthru
          _
        // Predicated region
        $region69: #{tpu_custom_call.1} parent=59 // pred_check
          %p439 = pneg %p95
        $region70: #{tpu_custom_call.1} parent=59 // pred_check_branch
          %441 = sbr.rel (%p439) target = $region72
        $region71: #{tpu_custom_call.1} parent=59 // pred_region
          %442 = dma.done [#allocation6], 256
        $region72: #{tpu_custom_call.1} parent=59 // pred_fallthru
          _
        // Predicated region
        $region73: #{tpu_custom_call.1} parent=59 // pred_check
          %p443 = pneg %p116
        $region74: #{tpu_custom_call.1} parent=59 // pred_check_branch
          %445 = sbr.rel (%p443) target = $region76
        $region75: #{tpu_custom_call.1} parent=59 // pred_region
          %446 = dma.done [#allocation9], 256
        $region76: #{tpu_custom_call.1} parent=59 // pred_fallthru
          _
        // Predicated region
        $region77: #{tpu_custom_call.1} parent=59 // pred_check
          %p447 = pneg %p137
        $region78: #{tpu_custom_call.1} parent=59 // pred_check_branch
          %449 = sbr.rel (%p447) target = $region80
        $region79: #{tpu_custom_call.1} parent=59 // pred_region
          %450 = dma.done [#allocation9], 1024
        $region80: #{tpu_custom_call.1} parent=59 // pred_fallthru
          _
        // Predicated region
        $region81: #{tpu_custom_call.1} parent=59 // pred_check
          %p451 = pneg %p158
        $region82: #{tpu_custom_call.1} parent=59 // pred_check_branch
          %453 = sbr.rel (%p451) target = $region84
        $region83: #{tpu_custom_call.1} parent=59 // pred_region
          %454 = dma.done [#allocation12], 512
        $region84: #{tpu_custom_call.1} parent=59 // pred_fallthru
          _
        // Predicated region
        $region85: #{tpu_custom_call.1} parent=59 // pred_check
          %p455 = pneg %p179
        $region86: #{tpu_custom_call.1} parent=59 // pred_check_branch
          %457 = sbr.rel (%p455) target = $region88
        $region87: #{tpu_custom_call.1} parent=59 // pred_region
          %458 = dma.done [#allocation12], 16
        $region88: #{tpu_custom_call.1} parent=59 // pred_fallthru
          _
        // Predicated region
        $region89: #{tpu_custom_call.1} parent=59 // pred_check
          %p459 = pneg %p200
        $region90: #{tpu_custom_call.1} parent=59 // pred_check_branch
          %461 = sbr.rel (%p459) target = $region92
        $region91: #{tpu_custom_call.1} parent=59 // pred_region
          %462 = dma.done [#allocation15], 16
        $region92: #{tpu_custom_call.1} parent=59 // pred_fallthru
          _
        // Predicated region
        $region93: #{tpu_custom_call.1} parent=59 // pred_check
          %p463 = pneg %p221
        $region94: #{tpu_custom_call.1} parent=59 // pred_check_branch
          %465 = sbr.rel (%p463) target = $region96
        $region95: #{tpu_custom_call.1} parent=59 // pred_region
          %466 = dma.done [#allocation15], 2048
        $region96: #{tpu_custom_call.1} parent=59 // pred_fallthru
          _
        // Predicated region
        $region97: #{tpu_custom_call.1} parent=59 // pred_check
          %p467 = pneg %p242
        $region98: #{tpu_custom_call.1} parent=59 // pred_check_branch
          %469 = sbr.rel (%p467) target = $region100
        $region99: #{tpu_custom_call.1} parent=59 // pred_region
          %470 = dma.done [#allocation18], 2048
        $region100: #{tpu_custom_call.1} parent=59 // pred_fallthru
          _
        %s471 = sand.u32 %s40, 1
        %s472 = scalar_lea.sflag [#allocation3], %s471
        %s473 = sand.u32 %s40, 1
        %s474 = smul.addr %s473, 16
        %s475 = scalar_lea.vmem [#allocation2], %s474
        %p476 = pneg %p53
        %p477 = pneg %p50
        %p478 = pneg %p74
        %p479 = pneg %p71
        %p480 = pneg %p95
        %p481 = pneg %p92
        %p482 = pneg %p116
        %p483 = pneg %p113
        %p484 = pneg %p137
        %p485 = pneg %p134
        %p486 = pneg %p158
        %p487 = pneg %p155
        %p488 = pneg %p179
        %p489 = pneg %p176
        %p490 = pneg %p200
        %p491 = pneg %p197
        %p492 = pneg %p221
        %p493 = pneg %p218
        %p494 = pneg %p242
        %p495 = pneg %p239
        %p496 = pneg %p268
        %p497 = pneg %p265
        %s498 = sand.u32 %s255, 1
        %s499 = scalar_lea.sflag [#allocation4], %s498
        %s500 = sand.u32 %s255, 1
        %s501 = smul.addr %s500, 16
        %s502 = scalar_lea.vmem [#allocation19], %s501
        %v504 = vld [vmem:[%s430] sm:$0xff]
        %v505 = vld [vmem:[%s430 + $0x8] sm:$0xff]
        %v506 = vmul.f32 %v504, %v504
        %v507 = vmul.f32 %v505, %v505
        %vm508 = vcmask 523264
        %v509 = vsel %vm508, %v506, 0.0
        %510 = vadd.xlane.f32.xlu0 %v509
        %v511 = vpop.xlane.xlu0 %510
        %v512 = vsel %vm508, %v507, 0.0
        %513 = vadd.xlane.f32.xlu0 %v512
        %v514 = vpop.xlane.xlu0 %513
        %v515 = vrcp.pop 64.0
        %v516 = vmul.f32 %v511, %v515
        %v517 = vmul.f32 %v514, %v515
        %v518 = vadd.f32 %v516, 1e-05
        %v519 = vadd.f32 %v517, 1e-05
        %v520 = vrsqrt.pop %v518
        %v521 = vrsqrt.pop %v519
        %v522 = vmul.f32 %v504, %v520
        %v523 = vmul.f32 %v505, %v521
        %v524 = vld [vmem:[#allocation5] sm:$0x1]
        %v526 = vlaneseq
        %v527 = vshrl.u32 %v526, 7
        %v528 = vsub.s32 0, %v527
        %v529 = vrot.slane %v524, %v528
        %v531 = vmul.f32 %v522, %v529
        %v532 = vmul.f32 %v523, %v529
        %v533 = vpack.c.bf16 %v532, %v531
        %v534 = vld [vmem:[#allocation10] sm:$0xff]
        %v535 = vld [vmem:[#allocation10 + $0x8] sm:$0xff]
        %v536 = vld [vmem:[#allocation10 + $0x10] sm:$0xff]
        %v537 = vld [vmem:[#allocation10 + $0x18] sm:$0xff]
        %v538 = vld [vmem:[#allocation10 + $0x20] sm:$0xff]
        %v539 = vld [vmem:[#allocation10 + $0x28] sm:$0xff]
        %v540 = vld [vmem:[#allocation10 + $0x30] sm:$0xff]
        %v541 = vld [vmem:[#allocation10 + $0x38] sm:$0xff]
        %v550 = vunpack.c.l.b16 %v534
        %v551 = vunpack.c.h.b16 %v534
        %v552 = vunpack.c.l.b16 %v535
        %v553 = vunpack.c.h.b16 %v535
        %v554 = vunpack.c.l.b16 %v536
        %v555 = vunpack.c.h.b16 %v536
        %v556 = vunpack.c.l.b16 %v537
        %v557 = vunpack.c.h.b16 %v537
        %v558 = vunpack.c.l.b16 %v538
        %v559 = vunpack.c.h.b16 %v538
        %v560 = vunpack.c.l.b16 %v539
        %v561 = vunpack.c.h.b16 %v539
        %v562 = vunpack.c.l.b16 %v540
        %v563 = vunpack.c.h.b16 %v540
        %v564 = vunpack.c.l.b16 %v541
        %v565 = vunpack.c.h.b16 %v541
        %v566 = vpack.c.b16 %v552, %v550
        %v567 = vpack.c.b16 %v553, %v551
        %v568 = vpack.c.b16 %v556, %v554
        %v569 = vpack.c.b16 %v557, %v555
        %v570 = vpack.c.b16 %v560, %v558
        %v571 = vpack.c.b16 %v561, %v559
        %v572 = vpack.c.b16 %v564, %v562
        %v573 = vpack.c.b16 %v565, %v563
        %v583 = vsel %vm508, %v533, 0
        %585 = vmatprep.subr.bf16.mxu0 %v567
        %586 = vmatpush1.bf16.msra.mxu0 %v566
        %587 = vmatprep.subr.bf16.mxu0 %v569
        %588 = vmatpush1.bf16.msra.mxu0 %v568
        %589 = vmatprep.subr.bf16.mxu0 %v571
        %590 = vmatpush1.bf16.msra.mxu0 %v570
        %591 = vmatprep.subr.bf16.mxu0 %v573
        %592 = vmatpush1.bf16.msra.mxu0 %v572
        %593 = vmatprep.subr.bf16.mxu0 0
        %594 = vmatpush1.bf16.msra.mxu0 0
        %595 = vmatprep.subr.bf16.mxu0 0
        %596 = vmatpush1.bf16.msra.mxu0 0
        %597 = vmatprep.subr.bf16.mxu0 0
        %598 = vmatpush1.bf16.msra.mxu0 0
        %599 = vmatprep.subr.bf16.mxu0 0
        %600 = vmatpush1.bf16.msra.mxu0 0
        %601 = vmatprep.subr.bf16.mxu0 0
        %602 = vmatpush1.bf16.msra.mxu0 0
        %603 = vmatprep.subr.bf16.mxu0 0
        %604 = vmatpush1.bf16.msra.mxu0 0
        %605 = vmatprep.subr.bf16.mxu0 0
        %606 = vmatpush1.bf16.msra.mxu0 0
        %607 = vmatprep.subr.bf16.mxu0 0
        %608 = vmatpush1.bf16.msra.mxu0 0
        %609 = vmatprep.subr.bf16.mxu0 0
        %610 = vmatpush1.bf16.msra.mxu0 0
        %611 = vmatprep.subr.bf16.mxu0 0
        %612 = vmatpush1.bf16.msra.mxu0 0
        %613 = vmatprep.subr.bf16.mxu0 0
        %614 = vmatpush1.bf16.msra.mxu0 0
        %615 = vmatprep.subr.bf16.mxu0 0
        %616 = vmatpush1.bf16.msra.mxu0 0
        %617 = vmatprep.mubr.bf16.mxu0 0
        %618 = vmatmul.mubr.bf16.gmra.mrb[0].mxu0 %v583
        %v619 = vpop.f32.mrb[0].mxu0
        %v620 = vadd.f32 0.0, %v619
        %v621 = vpop.f32.mrb[0].mxu0
        %v622 = vadd.f32 0.0, %v621
        %v623 = vpop.f32.mrb[0].mxu0
        %v624 = vadd.f32 0.0, %v623
        %v625 = vpop.f32.mrb[0].mxu0
        %v626 = vadd.f32 0.0, %v625
        %627 = vdwg.mxu0
        %v628 = vld [vmem:[#allocation7] sm:$0xff]
        %v629 = vld [vmem:[#allocation7 + $0x8] sm:$0xff]
        %v630 = vmul.f32 %v620, %v628
        %v631 = vmul.f32 %v624, %v629
        %v632 = vld [vmem:[#allocation8] sm:$0xff]
        %v633 = vld [vmem:[#allocation8 + $0x8] sm:$0xff]
        %v634 = vmul.f32 %v620, %v632
        %v635 = vmul.f32 %v624, %v633
        %v636 = vld [vmem:[#allocation11] sm:$0xf]
        %v637 = vld [vmem:[#allocation11 + $0x4] sm:$0xf]
        %v638 = vld [vmem:[#allocation11 + $0x8] sm:$0xf]
        %v639 = vld [vmem:[#allocation11 + $0xc] sm:$0xf]
        %v640 = vld [vmem:[#allocation11 + $0x10] sm:$0xf]
        %v641 = vld [vmem:[#allocation11 + $0x14] sm:$0xf]
        %v642 = vld [vmem:[#allocation11 + $0x18] sm:$0xf]
        %v643 = vld [vmem:[#allocation11 + $0x1c] sm:$0xf]
        %v644 = vld [vmem:[#allocation13] sm:$0x1]
        %v646 = vlaneseq
        %v647 = vshrl.u32 %v646, 7
        %v648 = vsub.s32 0, %v647
        %v649 = vrot.slane %v644, %v648
        %v651 = vadd.f32 %v504, %v649
        %v652 = vadd.f32 %v505, %v649
        %655 = vrot.lane.b32.xlu0 %v634, 120
        %v656 = vpop.permute.xlu0 %655
        %657 = vrot.lane.b32.xlu0 %v635, 120
        %v658 = vpop.permute.xlu0 %657
        %v661 = vsub.f32 %v630, %v656
        %v662 = vsub.f32 %v631, %v658
        %v663 = vpack.c.bf16 %v662, %v661
        %664 = vrot.lane.b32.xlu0 %v634, 8
        %v665 = vpop.permute.xlu0 %664
        %666 = vrot.lane.b32.xlu0 %v635, 8
        %v667 = vpop.permute.xlu0 %666
        %v670 = vsub.f32 %v630, %v665
        %v671 = vsub.f32 %v631, %v667
        %v672 = vpack.c.bf16 %v671, %v670
        %674 = vrot.lane.b32.xlu0 %v672, 120
        %v675 = vpop.permute.xlu0 %674
        %676 = vrot.lane.b32.xlu0 %v672, 56
        %v677 = vpop.permute.xlu0 %676
        %vm678 = vcmask 64512
        %v680 = vsel %vm678, %v675, 0
        %v683 = vsel %vm678, %v677, 0
        %685 = vmatprep.subr.bf16.mxu0 0
        %686 = vmatpush1.bf16.xpose.msra.mxu0 %v683
        %687 = vmatprep.subr.bf16.mxu0 0
        %688 = vmatpush1.bf16.xpose.msra.mxu0 0
        %689 = vmatprep.subr.bf16.mxu0 0
        %690 = vmatpush1.bf16.xpose.msra.mxu0 0
        %691 = vmatprep.subr.bf16.mxu0 0
        %692 = vmatpush1.bf16.xpose.msra.mxu0 0
        %693 = vmatprep.subr.bf16.mxu0 0
        %694 = vmatpush1.bf16.xpose.msra.mxu0 0
        %695 = vmatprep.subr.bf16.mxu0 0
        %696 = vmatpush1.bf16.xpose.msra.mxu0 0
        %697 = vmatprep.subr.bf16.mxu0 0
        %698 = vmatpush1.bf16.xpose.msra.mxu0 0
        %699 = vmatprep.subr.bf16.mxu0 0
        %700 = vmatpush1.bf16.xpose.msra.mxu0 0
        %701 = vmatprep.subr.bf16.mxu0 0
        %702 = vmatpush1.bf16.xpose.msra.mxu0 0
        %703 = vmatprep.subr.bf16.mxu0 0
        %704 = vmatpush1.bf16.xpose.msra.mxu0 0
        %705 = vmatprep.subr.bf16.mxu0 0
        %706 = vmatpush1.bf16.xpose.msra.mxu0 0
        %707 = vmatprep.subr.bf16.mxu0 0
        %708 = vmatpush1.bf16.xpose.msra.mxu0 0
        %709 = vmatprep.subr.bf16.mxu0 0
        %710 = vmatpush1.bf16.xpose.msra.mxu0 0
        %711 = vmatprep.subr.bf16.mxu0 0
        %712 = vmatpush1.bf16.xpose.msra.mxu0 0
        %713 = vmatprep.subr.bf16.mxu0 0
        %714 = vmatpush1.bf16.xpose.msra.mxu0 0
        %715 = vmatprep.subr.bf16.mxu0 0
        %716 = vmatpush1.bf16.xpose.msra.mxu0 0
        %717 = vmatprep.mubr.bf16.mxu0 0
        %718 = vmatmul.mubr.bf16.gmra.mrb[0].mxu0 %v680
        %v719 = vpop.f32.mrb[0].mxu0
        %v720 = vadd.f32 0.0, %v719
        %v721 = vpop.f32.mrb[0].mxu0
        %v722 = vpop.f32.mrb[0].mxu0
        %v723 = vadd.f32 0.0, %v722
        %v724 = vpop.f32.mrb[0].mxu0
        %725 = vdwg.mxu0
        %727 = vrot.lane.b32.xlu0 %v663, 64
        %v728 = vpop.permute.xlu0 %727
        %v730 = vsel %vm678, %v663, 0
        %v733 = vsel %vm678, %v728, 0
        %735 = vmatprep.subr.bf16.mxu0 0
        %736 = vmatpush1.bf16.xpose.msra.mxu0 %v733
        %737 = vmatprep.subr.bf16.mxu0 0
        %738 = vmatpush1.bf16.xpose.msra.mxu0 0
        %739 = vmatprep.subr.bf16.mxu0 0
        %740 = vmatpush1.bf16.xpose.msra.mxu0 0
        %741 = vmatprep.subr.bf16.mxu0 0
        %742 = vmatpush1.bf16.xpose.msra.mxu0 0
        %743 = vmatprep.subr.bf16.mxu0 0
        %744 = vmatpush1.bf16.xpose.msra.mxu0 0
        %745 = vmatprep.subr.bf16.mxu0 0
        %746 = vmatpush1.bf16.xpose.msra.mxu0 0
        %747 = vmatprep.subr.bf16.mxu0 0
        %748 = vmatpush1.bf16.xpose.msra.mxu0 0
        %749 = vmatprep.subr.bf16.mxu0 0
        %750 = vmatpush1.bf16.xpose.msra.mxu0 0
        %751 = vmatprep.subr.bf16.mxu0 0
        %752 = vmatpush1.bf16.xpose.msra.mxu0 0
        %753 = vmatprep.subr.bf16.mxu0 0
        %754 = vmatpush1.bf16.xpose.msra.mxu0 0
        %755 = vmatprep.subr.bf16.mxu0 0
        %756 = vmatpush1.bf16.xpose.msra.mxu0 0
        %757 = vmatprep.subr.bf16.mxu0 0
        %758 = vmatpush1.bf16.xpose.msra.mxu0 0
        %759 = vmatprep.subr.bf16.mxu0 0
        %760 = vmatpush1.bf16.xpose.msra.mxu0 0
        %761 = vmatprep.subr.bf16.mxu0 0
        %762 = vmatpush1.bf16.xpose.msra.mxu0 0
        %763 = vmatprep.subr.bf16.mxu0 0
        %764 = vmatpush1.bf16.xpose.msra.mxu0 0
        %765 = vmatprep.subr.bf16.mxu0 0
        %766 = vmatpush1.bf16.xpose.msra.mxu0 0
        %767 = vmatprep.mubr.bf16.mxu0 0
        %768 = vmatmul.mubr.bf16.gmra.mrb[0].mxu0 %v730
        %v769 = vpop.f32.mrb[0].mxu0
        %v770 = vadd.f32 %v720, %v769
        %v771 = vpop.f32.mrb[0].mxu0
        %v772 = vpop.f32.mrb[0].mxu0
        %v773 = vadd.f32 %v723, %v772
        %v774 = vpop.f32.mrb[0].mxu0
        %775 = vdwg.mxu0
        %vm776 = vcmask 130048
        %v777 = vsel %vm776, %v770, -inf
        %778 = vmax.xlane.f32.xlu0 %v777
        %v779 = vpop.xlane.xlu0 %778
        %v780 = vsel %vm776, %v773, -inf
        %781 = vmax.xlane.f32.xlu0 %v780
        %v782 = vpop.xlane.xlu0 %781
        %v783 = vsub.f32 %v770, %v779
        %v784 = vsub.f32 %v773, %v782
        %v785 = vmul.f32 %v783, 1.442695
        %v786 = vpow.pop %v785
        %v787 = vmul.f32 %v784, 1.442695
        %v788 = vpow.pop %v787
        %v789 = vsel %vm776, %v786, 0.0
        %790 = vadd.xlane.f32.xlu0 %v789
        %v791 = vpop.xlane.xlu0 %790
        %v792 = vsel %vm776, %v788, 0.0
        %793 = vadd.xlane.f32.xlu0 %v792
        %v794 = vpop.xlane.xlu0 %793
        %v795 = vrcp.pop %v791
        %v796 = vrcp.pop %v794
        %v797 = vmul.f32 %v786, %v795
        %v798 = vmul.f32 %v788, %v796
        %v799 = vpack.c.bf16 %v626, %v622
        %v800 = vpack.c.bf16 %v798, %v797
        %v802 = vsel %vm776, %v800, 0
        %804 = vmatprep.subr.bf16.mxu0 0
        %805 = vmatpush1.bf16.msra.mxu0 %v799
        %806 = vmatprep.subr.bf16.mxu0 0
        %807 = vmatpush1.bf16.msra.mxu0 0
        %808 = vmatprep.subr.bf16.mxu0 0
        %809 = vmatpush1.bf16.msra.mxu0 0
        %810 = vmatprep.subr.bf16.mxu0 0
        %811 = vmatpush1.bf16.msra.mxu0 0
        %812 = vmatprep.subr.bf16.mxu0 0
        %813 = vmatpush1.bf16.msra.mxu0 0
        %814 = vmatprep.subr.bf16.mxu0 0
        %815 = vmatpush1.bf16.msra.mxu0 0
        %816 = vmatprep.subr.bf16.mxu0 0
        %817 = vmatpush1.bf16.msra.mxu0 0
        %818 = vmatprep.subr.bf16.mxu0 0
        %819 = vmatpush1.bf16.msra.mxu0 0
        %820 = vmatprep.subr.bf16.mxu0 0
        %821 = vmatpush1.bf16.msra.mxu0 0
        %822 = vmatprep.subr.bf16.mxu0 0
        %823 = vmatpush1.bf16.msra.mxu0 0
        %824 = vmatprep.subr.bf16.mxu0 0
        %825 = vmatpush1.bf16.msra.mxu0 0
        %826 = vmatprep.subr.bf16.mxu0 0
        %827 = vmatpush1.bf16.msra.mxu0 0
        %828 = vmatprep.subr.bf16.mxu0 0
        %829 = vmatpush1.bf16.msra.mxu0 0
        %830 = vmatprep.subr.bf16.mxu0 0
        %831 = vmatpush1.bf16.msra.mxu0 0
        %832 = vmatprep.subr.bf16.mxu0 0
        %833 = vmatpush1.bf16.msra.mxu0 0
        %834 = vmatprep.subr.bf16.mxu0 0
        %835 = vmatpush1.bf16.msra.mxu0 0
        %836 = vmatprep.mubr.bf16.mxu0 0
        %837 = vmatmul.mubr.bf16.gmra.mrb[0].mxu0 %v802
        %v838 = vpop.f32.mrb[0].mxu0
        %v839 = vadd.f32 0.0, %v838
        %v840 = vpop.f32.mrb[0].mxu0
        %v841 = vpop.f32.mrb[0].mxu0
        %v842 = vadd.f32 0.0, %v841
        %v843 = vpop.f32.mrb[0].mxu0
        %844 = vdwg.mxu0
        %v845 = vpack.c.bf16 %v842, %v839
        %v848 = vunpack.c.l.b16 %v636
        %v849 = vunpack.c.l.b16 %v637
        %v850 = vpack.c.b16 %v849, %v848
        %v853 = vsel %vm776, %v845, 0
        %855 = vmatprep.subr.bf16.mxu0 0
        %856 = vmatpush1.bf16.msra.mxu0 %v850
        %857 = vmatprep.subr.bf16.mxu0 0
        %858 = vmatpush1.bf16.msra.mxu0 0
        %859 = vmatprep.subr.bf16.mxu0 0
        %860 = vmatpush1.bf16.msra.mxu0 0
        %861 = vmatprep.subr.bf16.mxu0 0
        %862 = vmatpush1.bf16.msra.mxu0 0
        %863 = vmatprep.subr.bf16.mxu0 0
        %864 = vmatpush1.bf16.msra.mxu0 0
        %865 = vmatprep.subr.bf16.mxu0 0
        %866 = vmatpush1.bf16.msra.mxu0 0
        %867 = vmatprep.subr.bf16.mxu0 0
        %868 = vmatpush1.bf16.msra.mxu0 0
        %869 = vmatprep.subr.bf16.mxu0 0
        %870 = vmatpush1.bf16.msra.mxu0 0
        %871 = vmatprep.subr.bf16.mxu0 0
        %872 = vmatpush1.bf16.msra.mxu0 0
        %873 = vmatprep.subr.bf16.mxu0 0
        %874 = vmatpush1.bf16.msra.mxu0 0
        %875 = vmatprep.subr.bf16.mxu0 0
        %876 = vmatpush1.bf16.msra.mxu0 0
        %877 = vmatprep.subr.bf16.mxu0 0
        %878 = vmatpush1.bf16.msra.mxu0 0
        %879 = vmatprep.subr.bf16.mxu0 0
        %880 = vmatpush1.bf16.msra.mxu0 0
        %881 = vmatprep.subr.bf16.mxu0 0
        %882 = vmatpush1.bf16.msra.mxu0 0
        %883 = vmatprep.subr.bf16.mxu0 0
        %884 = vmatpush1.bf16.msra.mxu0 0
        %885 = vmatprep.subr.bf16.mxu0 0
        %886 = vmatpush1.bf16.msra.mxu0 0
        %887 = vmatprep.mubr.bf16.mxu0 0
        %888 = vmatmul.mubr.bf16.gmra.mrb[0].mxu0 %v853
        %v889 = vpop.f32.mrb[0].mxu0
        %v890 = vadd.f32 0.0, %v889
        %v891 = vpop.f32.mrb[0].mxu0
        %v892 = vpop.f32.mrb[0].mxu0
        %v893 = vadd.f32 0.0, %v892
        %v894 = vpop.f32.mrb[0].mxu0
        %895 = vdwg.mxu0
        %v896 = vadd.f32 %v651, %v890
        %v897 = vadd.f32 %v652, %v893
        %898 = vrot.lane.b32.xlu0 %v672, 104
        %v899 = vpop.permute.xlu0 %898
        %900 = vrot.lane.b32.xlu0 %v672, 40
        %v901 = vpop.permute.xlu0 %900
        %v903 = vsel %vm678, %v899, 0
        %v906 = vsel %vm678, %v901, 0
        %908 = vmatprep.subr.bf16.mxu0 0
        %909 = vmatpush1.bf16.xpose.msra.mxu0 %v906
        %910 = vmatprep.subr.bf16.mxu0 0
        %911 = vmatpush1.bf16.xpose.msra.mxu0 0
        %912 = vmatprep.subr.bf16.mxu0 0
        %913 = vmatpush1.bf16.xpose.msra.mxu0 0
        %914 = vmatprep.subr.bf16.mxu0 0
        %915 = vmatpush1.bf16.xpose.msra.mxu0 0
        %916 = vmatprep.subr.bf16.mxu0 0
        %917 = vmatpush1.bf16.xpose.msra.mxu0 0
        %918 = vmatprep.subr.bf16.mxu0 0
        %919 = vmatpush1.bf16.xpose.msra.mxu0 0
        %920 = vmatprep.subr.bf16.mxu0 0
        %921 = vmatpush1.bf16.xpose.msra.mxu0 0
        %922 = vmatprep.subr.bf16.mxu0 0
        %923 = vmatpush1.bf16.xpose.msra.mxu0 0
        %924 = vmatprep.subr.bf16.mxu0 0
        %925 = vmatpush1.bf16.xpose.msra.mxu0 0
        %926 = vmatprep.subr.bf16.mxu0 0
        %927 = vmatpush1.bf16.xpose.msra.mxu0 0
        %928 = vmatprep.subr.bf16.mxu0 0
        %929 = vmatpush1.bf16.xpose.msra.mxu0 0
        %930 = vmatprep.subr.bf16.mxu0 0
        %931 = vmatpush1.bf16.xpose.msra.mxu0 0
        %932 = vmatprep.subr.bf16.mxu0 0
        %933 = vmatpush1.bf16.xpose.msra.mxu0 0
        %934 = vmatprep.subr.bf16.mxu0 0
        %935 = vmatpush1.bf16.xpose.msra.mxu0 0
        %936 = vmatprep.subr.bf16.mxu0 0
        %937 = vmatpush1.bf16.xpose.msra.mxu0 0
        %938 = vmatprep.subr.bf16.mxu0 0
        %939 = vmatpush1.bf16.xpose.msra.mxu0 0
        %940 = vmatprep.mubr.bf16.mxu0 0
        %941 = vmatmul.mubr.bf16.gmra.mrb[0].mxu0 %v903
        %v942 = vpop.f32.mrb[0].mxu0
        %v943 = vadd.f32 0.0, %v942
        %v944 = vpop.f32.mrb[0].mxu0
        %v945 = vpop.f32.mrb[0].mxu0
        %v946 = vadd.f32 0.0, %v945
        %v947 = vpop.f32.mrb[0].mxu0
        %948 = vdwg.mxu0
        %949 = vrot.lane.b32.xlu0 %v663, 112
        %v950 = vpop.permute.xlu0 %949
        %951 = vrot.lane.b32.xlu0 %v663, 48
        %v952 = vpop.permute.xlu0 %951
        %v954 = vsel %vm678, %v950, 0
        %v957 = vsel %vm678, %v952, 0
        %959 = vmatprep.subr.bf16.mxu0 0
        %960 = vmatpush1.bf16.xpose.msra.mxu0 %v957
        %961 = vmatprep.subr.bf16.mxu0 0
        %962 = vmatpush1.bf16.xpose.msra.mxu0 0
        %963 = vmatprep.subr.bf16.mxu0 0
        %964 = vmatpush1.bf16.xpose.msra.mxu0 0
        %965 = vmatprep.subr.bf16.mxu0 0
        %966 = vmatpush1.bf16.xpose.msra.mxu0 0
        %967 = vmatprep.subr.bf16.mxu0 0
        %968 = vmatpush1.bf16.xpose.msra.mxu0 0
        %969 = vmatprep.subr.bf16.mxu0 0
        %970 = vmatpush1.bf16.xpose.msra.mxu0 0
        %971 = vmatprep.subr.bf16.mxu0 0
        %972 = vmatpush1.bf16.xpose.msra.mxu0 0
        %973 = vmatprep.subr.bf16.mxu0 0
        %974 = vmatpush1.bf16.xpose.msra.mxu0 0
        %975 = vmatprep.subr.bf16.mxu0 0
        %976 = vmatpush1.bf16.xpose.msra.mxu0 0
        %977 = vmatprep.subr.bf16.mxu0 0
        %978 = vmatpush1.bf16.xpose.msra.mxu0 0
        %979 = vmatprep.subr.bf16.mxu0 0
        %980 = vmatpush1.bf16.xpose.msra.mxu0 0
        %981 = vmatprep.subr.bf16.mxu0 0
        %982 = vmatpush1.bf16.xpose.msra.mxu0 0
        %983 = vmatprep.subr.bf16.mxu0 0
        %984 = vmatpush1.bf16.xpose.msra.mxu0 0
        %985 = vmatprep.subr.bf16.mxu0 0
        %986 = vmatpush1.bf16.xpose.msra.mxu0 0
        %987 = vmatprep.subr.bf16.mxu0 0
        %988 = vmatpush1.bf16.xpose.msra.mxu0 0
        %989 = vmatprep.subr.bf16.mxu0 0
        %990 = vmatpush1.bf16.xpose.msra.mxu0 0
        %991 = vmatprep.mubr.bf16.mxu0 0
        %992 = vmatmul.mubr.bf16.gmra.mrb[0].mxu0 %v954
        %v993 = vpop.f32.mrb[0].mxu0
        %v994 = vadd.f32 %v943, %v993
        %v995 = vpop.f32.mrb[0].mxu0
        %v996 = vpop.f32.mrb[0].mxu0
        %v997 = vadd.f32 %v946, %v996
        %v998 = vpop.f32.mrb[0].mxu0
        %999 = vdwg.mxu0
        %v1000 = vsel %vm776, %v994, -inf
        %1001 = vmax.xlane.f32.xlu0 %v1000
        %v1002 = vpop.xlane.xlu0 %1001
        %v1003 = vsel %vm776, %v997, -inf
        %1004 = vmax.xlane.f32.xlu0 %v1003
        %v1005 = vpop.xlane.xlu0 %1004
        %v1006 = vsub.f32 %v994, %v1002
        %v1007 = vsub.f32 %v997, %v1005
        %v1008 = vmul.f32 %v1006, 1.442695
        %v1009 = vpow.pop %v1008
        %v1010 = vmul.f32 %v1007, 1.442695
        %v1011 = vpow.pop %v1010
        %v1012 = vsel %vm776, %v1009, 0.0
        %1013 = vadd.xlane.f32.xlu0 %v1012
        %v1014 = vpop.xlane.xlu0 %1013
        %v1015 = vsel %vm776, %v1011, 0.0
        %1016 = vadd.xlane.f32.xlu0 %v1015
        %v1017 = vpop.xlane.xlu0 %1016
        %v1018 = vrcp.pop %v1014
        %v1019 = vrcp.pop %v1017
        %v1020 = vmul.f32 %v1009, %v1018
        %v1021 = vmul.f32 %v1011, %v1019
        %v1022 = vpack.c.bf16 %v1021, %v1020
        %1024 = vrot.lane.b32.xlu0 %v799, 112
        %v1025 = vpop.permute.xlu0 %1024
        %v1028 = vsel %vm776, %v1022, 0
        %1030 = vmatprep.subr.bf16.mxu0 0
        %1031 = vmatpush1.bf16.msra.mxu0 %v1025
        %1032 = vmatprep.subr.bf16.mxu0 0
        %1033 = vmatpush1.bf16.msra.mxu0 0
        %1034 = vmatprep.subr.bf16.mxu0 0
        %1035 = vmatpush1.bf16.msra.mxu0 0
        %1036 = vmatprep.subr.bf16.mxu0 0
        %1037 = vmatpush1.bf16.msra.mxu0 0
        %1038 = vmatprep.subr.bf16.mxu0 0
        %1039 = vmatpush1.bf16.msra.mxu0 0
        %1040 = vmatprep.subr.bf16.mxu0 0
        %1041 = vmatpush1.bf16.msra.mxu0 0
        %1042 = vmatprep.subr.bf16.mxu0 0
        %1043 = vmatpush1.bf16.msra.mxu0 0
        %1044 = vmatprep.subr.bf16.mxu0 0
        %1045 = vmatpush1.bf16.msra.mxu0 0
        %1046 = vmatprep.subr.bf16.mxu0 0
        %1047 = vmatpush1.bf16.msra.mxu0 0
        %1048 = vmatprep.subr.bf16.mxu0 0
        %1049 = vmatpush1.bf16.msra.mxu0 0
        %1050 = vmatprep.subr.bf16.mxu0 0
        %1051 = vmatpush1.bf16.msra.mxu0 0
        %1052 = vmatprep.subr.bf16.mxu0 0
        %1053 = vmatpush1.bf16.msra.mxu0 0
        %1054 = vmatprep.subr.bf16.mxu0 0
        %1055 = vmatpush1.bf16.msra.mxu0 0
        %1056 = vmatprep.subr.bf16.mxu0 0
        %1057 = vmatpush1.bf16.msra.mxu0 0
        %1058 = vmatprep.subr.bf16.mxu0 0
        %1059 = vmatpush1.bf16.msra.mxu0 0
        %1060 = vmatprep.subr.bf16.mxu0 0
        %1061 = vmatpush1.bf16.msra.mxu0 0
        %1062 = vmatprep.mubr.bf16.mxu0 0
        %1063 = vmatmul.mubr.bf16.gmra.mrb[0].mxu0 %v1028
        %v1064 = vpop.f32.mrb[0].mxu0
        %v1065 = vadd.f32 0.0, %v1064
        %v1066 = vpop.f32.mrb[0].mxu0
        %v1067 = vpop.f32.mrb[0].mxu0
        %v1068 = vadd.f32 0.0, %v1067
        %v1069 = vpop.f32.mrb[0].mxu0
        %1070 = vdwg.mxu0
        %v1071 = vpack.c.bf16 %v1068, %v1065
        %v1074 = vunpack.c.l.b16 %v638
        %v1075 = vunpack.c.l.b16 %v639
        %v1076 = vpack.c.b16 %v1075, %v1074
        %v1079 = vsel %vm776, %v1071, 0
        %1081 = vmatprep.subr.bf16.mxu0 0
        %1082 = vmatpush1.bf16.msra.mxu0 %v1076
        %1083 = vmatprep.subr.bf16.mxu0 0
        %1084 = vmatpush1.bf16.msra.mxu0 0
        %1085 = vmatprep.subr.bf16.mxu0 0
        %1086 = vmatpush1.bf16.msra.mxu0 0
        %1087 = vmatprep.subr.bf16.mxu0 0
        %1088 = vmatpush1.bf16.msra.mxu0 0
        %1089 = vmatprep.subr.bf16.mxu0 0
        %1090 = vmatpush1.bf16.msra.mxu0 0
        %1091 = vmatprep.subr.bf16.mxu0 0
        %1092 = vmatpush1.bf16.msra.mxu0 0
        %1093 = vmatprep.subr.bf16.mxu0 0
        %1094 = vmatpush1.bf16.msra.mxu0 0
        %1095 = vmatprep.subr.bf16.mxu0 0
        %1096 = vmatpush1.bf16.msra.mxu0 0
        %1097 = vmatprep.subr.bf16.mxu0 0
        %1098 = vmatpush1.bf16.msra.mxu0 0
        %1099 = vmatprep.subr.bf16.mxu0 0
        %1100 = vmatpush1.bf16.msra.mxu0 0
        %1101 = vmatprep.subr.bf16.mxu0 0
        %1102 = vmatpush1.bf16.msra.mxu0 0
        %1103 = vmatprep.subr.bf16.mxu0 0
        %1104 = vmatpush1.bf16.msra.mxu0 0
        %1105 = vmatprep.subr.bf16.mxu0 0
        %1106 = vmatpush1.bf16.msra.mxu0 0
        %1107 = vmatprep.subr.bf16.mxu0 0
        %1108 = vmatpush1.bf16.msra.mxu0 0
        %1109 = vmatprep.subr.bf16.mxu0 0
        %1110 = vmatpush1.bf16.msra.mxu0 0
        %1111 = vmatprep.subr.bf16.mxu0 0
        %1112 = vmatpush1.bf16.msra.mxu0 0
        %1113 = vmatprep.mubr.bf16.mxu0 0
        %1114 = vmatmul.mubr.bf16.gmra.mrb[0].mxu0 %v1079
        %v1115 = vpop.f32.mrb[0].mxu0
        %v1116 = vadd.f32 0.0, %v1115
        %v1117 = vpop.f32.mrb[0].mxu0
        %v1118 = vpop.f32.mrb[0].mxu0
        %v1119 = vadd.f32 0.0, %v1118
        %v1120 = vpop.f32.mrb[0].mxu0
        %1121 = vdwg.mxu0
        %v1122 = vadd.f32 %v896, %v1116
        %v1123 = vadd.f32 %v897, %v1119
        %1124 = vrot.lane.b32.xlu0 %v672, 88
        %v1125 = vpop.permute.xlu0 %1124
        %1126 = vrot.lane.b32.xlu0 %v672, 24
        %v1127 = vpop.permute.xlu0 %1126
        %v1129 = vsel %vm678, %v1125, 0
        %v1132 = vsel %vm678, %v1127, 0
        %1134 = vmatprep.subr.bf16.mxu0 0
        %1135 = vmatpush1.bf16.xpose.msra.mxu0 %v1132
        %1136 = vmatprep.subr.bf16.mxu0 0
        %1137 = vmatpush1.bf16.xpose.msra.mxu0 0
        %1138 = vmatprep.subr.bf16.mxu0 0
        %1139 = vmatpush1.bf16.xpose.msra.mxu0 0
        %1140 = vmatprep.subr.bf16.mxu0 0
        %1141 = vmatpush1.bf16.xpose.msra.mxu0 0
        %1142 = vmatprep.subr.bf16.mxu0 0
        %1143 = vmatpush1.bf16.xpose.msra.mxu0 0
        %1144 = vmatprep.subr.bf16.mxu0 0
        %1145 = vmatpush1.bf16.xpose.msra.mxu0 0
        %1146 = vmatprep.subr.bf16.mxu0 0
        %1147 = vmatpush1.bf16.xpose.msra.mxu0 0
        %1148 = vmatprep.subr.bf16.mxu0 0
        %1149 = vmatpush1.bf16.xpose.msra.mxu0 0
        %1150 = vmatprep.subr.bf16.mxu0 0
        %1151 = vmatpush1.bf16.xpose.msra.mxu0 0
        %1152 = vmatprep.subr.bf16.mxu0 0
        %1153 = vmatpush1.bf16.xpose.msra.mxu0 0
        %1154 = vmatprep.subr.bf16.mxu0 0
        %1155 = vmatpush1.bf16.xpose.msra.mxu0 0
        %1156 = vmatprep.subr.bf16.mxu0 0
        %1157 = vmatpush1.bf16.xpose.msra.mxu0 0
        %1158 = vmatprep.subr.bf16.mxu0 0
        %1159 = vmatpush1.bf16.xpose.msra.mxu0 0
        %1160 = vmatprep.subr.bf16.mxu0 0
        %1161 = vmatpush1.bf16.xpose.msra.mxu0 0
        %1162 = vmatprep.subr.bf16.mxu0 0
        %1163 = vmatpush1.bf16.xpose.msra.mxu0 0
        %1164 = vmatprep.subr.bf16.mxu0 0
        %1165 = vmatpush1.bf16.xpose.msra.mxu0 0
        %1166 = vmatprep.mubr.bf16.mxu0 0
        %1167 = vmatmul.mubr.bf16.gmra.mrb[0].mxu0 %v1129
        %v1168 = vpop.f32.mrb[0].mxu0
        %v1169 = vadd.f32 0.0, %v1168
        %v1170 = vpop.f32.mrb[0].mxu0
        %v1171 = vpop.f32.mrb[0].mxu0
        %v1172 = vadd.f32 0.0, %v1171
        %v1173 = vpop.f32.mrb[0].mxu0
        %1174 = vdwg.mxu0
        %1175 = vrot.lane.b32.xlu0 %v663, 96
        %v1176 = vpop.permute.xlu0 %1175
        %1177 = vrot.lane.b32.xlu0 %v663, 32
        %v1178 = vpop.permute.xlu0 %1177
        %v1180 = vsel %vm678, %v1176, 0
        %v1183 = vsel %vm678, %v1178, 0
        %1185 = vmatprep.subr.bf16.mxu0 0
        %1186 = vmatpush1.bf16.xpose.msra.mxu0 %v1183
        %1187 = vmatprep.subr.bf16.mxu0 0
        %1188 = vmatpush1.bf16.xpose.msra.mxu0 0
        %1189 = vmatprep.subr.bf16.mxu0 0
        %1190 = vmatpush1.bf16.xpose.msra.mxu0 0
        %1191 = vmatprep.subr.bf16.mxu0 0
        %1192 = vmatpush1.bf16.xpose.msra.mxu0 0
        %1193 = vmatprep.subr.bf16.mxu0 0
        %1194 = vmatpush1.bf16.xpose.msra.mxu0 0
        %1195 = vmatprep.subr.bf16.mxu0 0
        %1196 = vmatpush1.bf16.xpose.msra.mxu0 0
        %1197 = vmatprep.subr.bf16.mxu0 0
        %1198 = vmatpush1.bf16.xpose.msra.mxu0 0
        %1199 = vmatprep.subr.bf16.mxu0 0
        %1200 = vmatpush1.bf16.xpose.msra.mxu0 0
        %1201 = vmatprep.subr.bf16.mxu0 0
        %1202 = vmatpush1.bf16.xpose.msra.mxu0 0
        %1203 = vmatprep.subr.bf16.mxu0 0
        %1204 = vmatpush1.bf16.xpose.msra.mxu0 0
        %1205 = vmatprep.subr.bf16.mxu0 0
        %1206 = vmatpush1.bf16.xpose.msra.mxu0 0
        %1207 = vmatprep.subr.bf16.mxu0 0
        %1208 = vmatpush1.bf16.xpose.msra.mxu0 0
        %1209 = vmatprep.subr.bf16.mxu0 0
        %1210 = vmatpush1.bf16.xpose.msra.mxu0 0
        %1211 = vmatprep.subr.bf16.mxu0 0
        %1212 = vmatpush1.bf16.xpose.msra.mxu0 0
        %1213 = vmatprep.subr.bf16.mxu0 0
        %1214 = vmatpush1.bf16.xpose.msra.mxu0 0
        %1215 = vmatprep.subr.bf16.mxu0 0
        %1216 = vmatpush1.bf16.xpose.msra.mxu0 0
        %1217 = vmatprep.mubr.bf16.mxu0 0
        %1218 = vmatmul.mubr.bf16.gmra.mrb[0].mxu0 %v1180
        %v1219 = vpop.f32.mrb[0].mxu0
        %v1220 = vadd.f32 %v1169, %v1219
        %v1221 = vpop.f32.mrb[0].mxu0
        %v1222 = vpop.f32.mrb[0].mxu0
        %v1223 = vadd.f32 %v1172, %v1222
        %v1224 = vpop.f32.mrb[0].mxu0
        %1225 = vdwg.mxu0
        %v1226 = vsel %vm776, %v1220, -inf
        %1227 = vmax.xlane.f32.xlu0 %v1226
        %v1228 = vpop.xlane.xlu0 %1227
        %v1229 = vsel %vm776, %v1223, -inf
        %1230 = vmax.xlane.f32.xlu0 %v1229
        %v1231 = vpop.xlane.xlu0 %1230
        %v1232 = vsub.f32 %v1220, %v1228
        %v1233 = vsub.f32 %v1223, %v1231
        %v1234 = vmul.f32 %v1232, 1.442695
        %v1235 = vpow.pop %v1234
        %v1236 = vmul.f32 %v1233, 1.442695
        %v1237 = vpow.pop %v1236
        %v1238 = vsel %vm776, %v1235, 0.0
        %1239 = vadd.xlane.f32.xlu0 %v1238
        %v1240 = vpop.xlane.xlu0 %1239
        %v1241 = vsel %vm776, %v1237, 0.0
        %1242 = vadd.xlane.f32.xlu0 %v1241
        %v1243 = vpop.xlane.xlu0 %1242
        %v1244 = vrcp.pop %v1240
        %v1245 = vrcp.pop %v1243
        %v1246 = vmul.f32 %v1235, %v1244
        %v1247 = vmul.f32 %v1237, %v1245
        %v1248 = vpack.c.bf16 %v1247, %v1246
        %1249 = vrot.lane.b32.xlu0 %v799, 96
        %v1250 = vpop.permute.xlu0 %1249
        %v1253 = vsel %vm776, %v1248, 0
        %1255 = vmatprep.subr.bf16.mxu0 0
        %1256 = vmatpush1.bf16.msra.mxu0 %v1250
        %1257 = vmatprep.subr.bf16.mxu0 0
        %1258 = vmatpush1.bf16.msra.mxu0 0
        %1259 = vmatprep.subr.bf16.mxu0 0
        %1260 = vmatpush1.bf16.msra.mxu0 0
        %1261 = vmatprep.subr.bf16.mxu0 0
        %1262 = vmatpush1.bf16.msra.mxu0 0
        %1263 = vmatprep.subr.bf16.mxu0 0
        %1264 = vmatpush1.bf16.msra.mxu0 0
        %1265 = vmatprep.subr.bf16.mxu0 0
        %1266 = vmatpush1.bf16.msra.mxu0 0
        %1267 = vmatprep.subr.bf16.mxu0 0
        %1268 = vmatpush1.bf16.msra.mxu0 0
        %1269 = vmatprep.subr.bf16.mxu0 0
        %1270 = vmatpush1.bf16.msra.mxu0 0
        %1271 = vmatprep.subr.bf16.mxu0 0
        %1272 = vmatpush1.bf16.msra.mxu0 0
        %1273 = vmatprep.subr.bf16.mxu0 0
        %1274 = vmatpush1.bf16.msra.mxu0 0
        %1275 = vmatprep.subr.bf16.mxu0 0
        %1276 = vmatpush1.bf16.msra.mxu0 0
        %1277 = vmatprep.subr.bf16.mxu0 0
        %1278 = vmatpush1.bf16.msra.mxu0 0
        %1279 = vmatprep.subr.bf16.mxu0 0
        %1280 = vmatpush1.bf16.msra.mxu0 0
        %1281 = vmatprep.subr.bf16.mxu0 0
        %1282 = vmatpush1.bf16.msra.mxu0 0
        %1283 = vmatprep.subr.bf16.mxu0 0
        %1284 = vmatpush1.bf16.msra.mxu0 0
        %1285 = vmatprep.subr.bf16.mxu0 0
        %1286 = vmatpush1.bf16.msra.mxu0 0
        %1287 = vmatprep.mubr.bf16.mxu0 0
        %1288 = vmatmul.mubr.bf16.gmra.mrb[0].mxu0 %v1253
        %v1289 = vpop.f32.mrb[0].mxu0
        %v1290 = vadd.f32 0.0, %v1289
        %v1291 = vpop.f32.mrb[0].mxu0
        %v1292 = vpop.f32.mrb[0].mxu0
        %v1293 = vadd.f32 0.0, %v1292
        %v1294 = vpop.f32.mrb[0].mxu0
        %1295 = vdwg.mxu0
        %v1296 = vpack.c.bf16 %v1293, %v1290
        %v1299 = vunpack.c.l.b16 %v640
        %v1300 = vunpack.c.l.b16 %v641
        %v1301 = vpack.c.b16 %v1300, %v1299
        %v1304 = vsel %vm776, %v1296, 0
        %1306 = vmatprep.subr.bf16.mxu0 0
        %1307 = vmatpush1.bf16.msra.mxu0 %v1301
        %1308 = vmatprep.subr.bf16.mxu0 0
        %1309 = vmatpush1.bf16.msra.mxu0 0
        %1310 = vmatprep.subr.bf16.mxu0 0
        %1311 = vmatpush1.bf16.msra.mxu0 0
        %1312 = vmatprep.subr.bf16.mxu0 0
        %1313 = vmatpush1.bf16.msra.mxu0 0
        %1314 = vmatprep.subr.bf16.mxu0 0
        %1315 = vmatpush1.bf16.msra.mxu0 0
        %1316 = vmatprep.subr.bf16.mxu0 0
        %1317 = vmatpush1.bf16.msra.mxu0 0
        %1318 = vmatprep.subr.bf16.mxu0 0
        %1319 = vmatpush1.bf16.msra.mxu0 0
        %1320 = vmatprep.subr.bf16.mxu0 0
        %1321 = vmatpush1.bf16.msra.mxu0 0
        %1322 = vmatprep.subr.bf16.mxu0 0
        %1323 = vmatpush1.bf16.msra.mxu0 0
        %1324 = vmatprep.subr.bf16.mxu0 0
        %1325 = vmatpush1.bf16.msra.mxu0 0
        %1326 = vmatprep.subr.bf16.mxu0 0
        %1327 = vmatpush1.bf16.msra.mxu0 0
        %1328 = vmatprep.subr.bf16.mxu0 0
        %1329 = vmatpush1.bf16.msra.mxu0 0
        %1330 = vmatprep.subr.bf16.mxu0 0
        %1331 = vmatpush1.bf16.msra.mxu0 0
        %1332 = vmatprep.subr.bf16.mxu0 0
        %1333 = vmatpush1.bf16.msra.mxu0 0
        %1334 = vmatprep.subr.bf16.mxu0 0
        %1335 = vmatpush1.bf16.msra.mxu0 0
        %1336 = vmatprep.subr.bf16.mxu0 0
        %1337 = vmatpush1.bf16.msra.mxu0 0
        %1338 = vmatprep.mubr.bf16.mxu0 0
        %1339 = vmatmul.mubr.bf16.gmra.mrb[0].mxu0 %v1304
        %v1340 = vpop.f32.mrb[0].mxu0
        %v1341 = vadd.f32 0.0, %v1340
        %v1342 = vpop.f32.mrb[0].mxu0
        %v1343 = vpop.f32.mrb[0].mxu0
        %v1344 = vadd.f32 0.0, %v1343
        %v1345 = vpop.f32.mrb[0].mxu0
        %1346 = vdwg.mxu0
        %v1347 = vadd.f32 %v1122, %v1341
        %v1348 = vadd.f32 %v1123, %v1344
        %1349 = vrot.lane.b32.xlu0 %v672, 72
        %v1350 = vpop.permute.xlu0 %1349
        %1351 = vrot.lane.b32.xlu0 %v672, 8
        %v1352 = vpop.permute.xlu0 %1351
        %v1354 = vsel %vm678, %v1350, 0
        %v1357 = vsel %vm678, %v1352, 0
        %1359 = vmatprep.subr.bf16.mxu0 0
        %1360 = vmatpush1.bf16.xpose.msra.mxu0 %v1357
        %1361 = vmatprep.subr.bf16.mxu0 0
        %1362 = vmatpush1.bf16.xpose.msra.mxu0 0
        %1363 = vmatprep.subr.bf16.mxu0 0
        %1364 = vmatpush1.bf16.xpose.msra.mxu0 0
        %1365 = vmatprep.subr.bf16.mxu0 0
        %1366 = vmatpush1.bf16.xpose.msra.mxu0 0
        %1367 = vmatprep.subr.bf16.mxu0 0
        %1368 = vmatpush1.bf16.xpose.msra.mxu0 0
        %1369 = vmatprep.subr.bf16.mxu0 0
        %1370 = vmatpush1.bf16.xpose.msra.mxu0 0
        %1371 = vmatprep.subr.bf16.mxu0 0
        %1372 = vmatpush1.bf16.xpose.msra.mxu0 0
        %1373 = vmatprep.subr.bf16.mxu0 0
        %1374 = vmatpush1.bf16.xpose.msra.mxu0 0
        %1375 = vmatprep.subr.bf16.mxu0 0
        %1376 = vmatpush1.bf16.xpose.msra.mxu0 0
        %1377 = vmatprep.subr.bf16.mxu0 0
        %1378 = vmatpush1.bf16.xpose.msra.mxu0 0
        %1379 = vmatprep.subr.bf16.mxu0 0
        %1380 = vmatpush1.bf16.xpose.msra.mxu0 0
        %1381 = vmatprep.subr.bf16.mxu0 0
        %1382 = vmatpush1.bf16.xpose.msra.mxu0 0
        %1383 = vmatprep.subr.bf16.mxu0 0
        %1384 = vmatpush1.bf16.xpose.msra.mxu0 0
        %1385 = vmatprep.subr.bf16.mxu0 0
        %1386 = vmatpush1.bf16.xpose.msra.mxu0 0
        %1387 = vmatprep.subr.bf16.mxu0 0
        %1388 = vmatpush1.bf16.xpose.msra.mxu0 0
        %1389 = vmatprep.subr.bf16.mxu0 0
        %1390 = vmatpush1.bf16.xpose.msra.mxu0 0
        %1391 = vmatprep.mubr.bf16.mxu0 0
        %1392 = vmatmul.mubr.bf16.gmra.mrb[0].mxu0 %v1354
        %v1393 = vpop.f32.mrb[0].mxu0
        %v1394 = vadd.f32 0.0, %v1393
        %v1395 = vpop.f32.mrb[0].mxu0
        %v1396 = vpop.f32.mrb[0].mxu0
        %v1397 = vadd.f32 0.0, %v1396
        %v1398 = vpop.f32.mrb[0].mxu0
        %1399 = vdwg.mxu0
        %1400 = vrot.lane.b32.xlu0 %v663, 80
        %v1401 = vpop.permute.xlu0 %1400
        %1402 = vrot.lane.b32.xlu0 %v663, 16
        %v1403 = vpop.permute.xlu0 %1402
        %v1405 = vsel %vm678, %v1401, 0
        %v1408 = vsel %vm678, %v1403, 0
        %1410 = vmatprep.subr.bf16.mxu0 0
        %1411 = vmatpush1.bf16.xpose.msra.mxu0 %v1408
        %1412 = vmatprep.subr.bf16.mxu0 0
        %1413 = vmatpush1.bf16.xpose.msra.mxu0 0
        %1414 = vmatprep.subr.bf16.mxu0 0
        %1415 = vmatpush1.bf16.xpose.msra.mxu0 0
        %1416 = vmatprep.subr.bf16.mxu0 0
        %1417 = vmatpush1.bf16.xpose.msra.mxu0 0
        %1418 = vmatprep.subr.bf16.mxu0 0
        %1419 = vmatpush1.bf16.xpose.msra.mxu0 0
        %1420 = vmatprep.subr.bf16.mxu0 0
        %1421 = vmatpush1.bf16.xpose.msra.mxu0 0
        %1422 = vmatprep.subr.bf16.mxu0 0
        %1423 = vmatpush1.bf16.xpose.msra.mxu0 0
        %1424 = vmatprep.subr.bf16.mxu0 0
        %1425 = vmatpush1.bf16.xpose.msra.mxu0 0
        %1426 = vmatprep.subr.bf16.mxu0 0
        %1427 = vmatpush1.bf16.xpose.msra.mxu0 0
        %1428 = vmatprep.subr.bf16.mxu0 0
        %1429 = vmatpush1.bf16.xpose.msra.mxu0 0
        %1430 = vmatprep.subr.bf16.mxu0 0
        %1431 = vmatpush1.bf16.xpose.msra.mxu0 0
        %1432 = vmatprep.subr.bf16.mxu0 0
        %1433 = vmatpush1.bf16.xpose.msra.mxu0 0
        %1434 = vmatprep.subr.bf16.mxu0 0
        %1435 = vmatpush1.bf16.xpose.msra.mxu0 0
        %1436 = vmatprep.subr.bf16.mxu0 0
        %1437 = vmatpush1.bf16.xpose.msra.mxu0 0
        %1438 = vmatprep.subr.bf16.mxu0 0
        %1439 = vmatpush1.bf16.xpose.msra.mxu0 0
        %1440 = vmatprep.subr.bf16.mxu0 0
        %1441 = vmatpush1.bf16.xpose.msra.mxu0 0
        %1442 = vmatprep.mubr.bf16.mxu0 0
        %1443 = vmatmul.mubr.bf16.gmra.mrb[0].mxu0 %v1405
        %v1444 = vpop.f32.mrb[0].mxu0
        %v1445 = vadd.f32 %v1394, %v1444
        %v1446 = vpop.f32.mrb[0].mxu0
        %v1447 = vpop.f32.mrb[0].mxu0
        %v1448 = vadd.f32 %v1397, %v1447
        %v1449 = vpop.f32.mrb[0].mxu0
        %1450 = vdwg.mxu0
        %v1451 = vsel %vm776, %v1445, -inf
        %1452 = vmax.xlane.f32.xlu0 %v1451
        %v1453 = vpop.xlane.xlu0 %1452
        %v1454 = vsel %vm776, %v1448, -inf
        %1455 = vmax.xlane.f32.xlu0 %v1454
        %v1456 = vpop.xlane.xlu0 %1455
        %v1457 = vsub.f32 %v1445, %v1453
        %v1458 = vsub.f32 %v1448, %v1456
        %v1459 = vmul.f32 %v1457, 1.442695
        %v1460 = vpow.pop %v1459
        %v1461 = vmul.f32 %v1458, 1.442695
        %v1462 = vpow.pop %v1461
        %v1463 = vsel %vm776, %v1460, 0.0
        %1464 = vadd.xlane.f32.xlu0 %v1463
        %v1465 = vpop.xlane.xlu0 %1464
        %v1466 = vsel %vm776, %v1462, 0.0
        %1467 = vadd.xlane.f32.xlu0 %v1466
        %v1468 = vpop.xlane.xlu0 %1467
        %v1469 = vrcp.pop %v1465
        %v1470 = vrcp.pop %v1468
        %v1471 = vmul.f32 %v1460, %v1469
        %v1472 = vmul.f32 %v1462, %v1470
        %v1473 = vpack.c.bf16 %v1472, %v1471
        %1474 = vrot.lane.b32.xlu0 %v799, 80
        %v1475 = vpop.permute.xlu0 %1474
        %v1478 = vsel %vm776, %v1473, 0
        %1480 = vmatprep.subr.bf16.mxu0 0
        %1481 = vmatpush1.bf16.msra.mxu0 %v1475
        %1482 = vmatprep.subr.bf16.mxu0 0
        %1483 = vmatpush1.bf16.msra.mxu0 0
        %1484 = vmatprep.subr.bf16.mxu0 0
        %1485 = vmatpush1.bf16.msra.mxu0 0
        %1486 = vmatprep.subr.bf16.mxu0 0
        %1487 = vmatpush1.bf16.msra.mxu0 0
        %1488 = vmatprep.subr.bf16.mxu0 0
        %1489 = vmatpush1.bf16.msra.mxu0 0
        %1490 = vmatprep.subr.bf16.mxu0 0
        %1491 = vmatpush1.bf16.msra.mxu0 0
        %1492 = vmatprep.subr.bf16.mxu0 0
        %1493 = vmatpush1.bf16.msra.mxu0 0
        %1494 = vmatprep.subr.bf16.mxu0 0
        %1495 = vmatpush1.bf16.msra.mxu0 0
        %1496 = vmatprep.subr.bf16.mxu0 0
        %1497 = vmatpush1.bf16.msra.mxu0 0
        %1498 = vmatprep.subr.bf16.mxu0 0
        %1499 = vmatpush1.bf16.msra.mxu0 0
        %1500 = vmatprep.subr.bf16.mxu0 0
        %1501 = vmatpush1.bf16.msra.mxu0 0
        %1502 = vmatprep.subr.bf16.mxu0 0
        %1503 = vmatpush1.bf16.msra.mxu0 0
        %1504 = vmatprep.subr.bf16.mxu0 0
        %1505 = vmatpush1.bf16.msra.mxu0 0
        %1506 = vmatprep.subr.bf16.mxu0 0
        %1507 = vmatpush1.bf16.msra.mxu0 0
        %1508 = vmatprep.subr.bf16.mxu0 0
        %1509 = vmatpush1.bf16.msra.mxu0 0
        %1510 = vmatprep.subr.bf16.mxu0 0
        %1511 = vmatpush1.bf16.msra.mxu0 0
        %1512 = vmatprep.mubr.bf16.mxu0 0
        %1513 = vmatmul.mubr.bf16.gmra.mrb[0].mxu0 %v1478
        %v1514 = vpop.f32.mrb[0].mxu0
        %v1515 = vadd.f32 0.0, %v1514
        %v1516 = vpop.f32.mrb[0].mxu0
        %v1517 = vpop.f32.mrb[0].mxu0
        %v1518 = vadd.f32 0.0, %v1517
        %v1519 = vpop.f32.mrb[0].mxu0
        %1520 = vdwg.mxu0
        %v1521 = vpack.c.bf16 %v1518, %v1515
        %v1524 = vunpack.c.l.b16 %v642
        %v1525 = vunpack.c.l.b16 %v643
        %v1526 = vpack.c.b16 %v1525, %v1524
        %v1529 = vsel %vm776, %v1521, 0
        %1531 = vmatprep.subr.bf16.mxu0 0
        %1532 = vmatpush1.bf16.msra.mxu0 %v1526
        %1533 = vmatprep.subr.bf16.mxu0 0
        %1534 = vmatpush1.bf16.msra.mxu0 0
        %1535 = vmatprep.subr.bf16.mxu0 0
        %1536 = vmatpush1.bf16.msra.mxu0 0
        %1537 = vmatprep.subr.bf16.mxu0 0
        %1538 = vmatpush1.bf16.msra.mxu0 0
        %1539 = vmatprep.subr.bf16.mxu0 0
        %1540 = vmatpush1.bf16.msra.mxu0 0
        %1541 = vmatprep.subr.bf16.mxu0 0
        %1542 = vmatpush1.bf16.msra.mxu0 0
        %1543 = vmatprep.subr.bf16.mxu0 0
        %1544 = vmatpush1.bf16.msra.mxu0 0
        %1545 = vmatprep.subr.bf16.mxu0 0
        %1546 = vmatpush1.bf16.msra.mxu0 0
        %1547 = vmatprep.subr.bf16.mxu0 0
        %1548 = vmatpush1.bf16.msra.mxu0 0
        %1549 = vmatprep.subr.bf16.mxu0 0
        %1550 = vmatpush1.bf16.msra.mxu0 0
        %1551 = vmatprep.subr.bf16.mxu0 0
        %1552 = vmatpush1.bf16.msra.mxu0 0
        %1553 = vmatprep.subr.bf16.mxu0 0
        %1554 = vmatpush1.bf16.msra.mxu0 0
        %1555 = vmatprep.subr.bf16.mxu0 0
        %1556 = vmatpush1.bf16.msra.mxu0 0
        %1557 = vmatprep.subr.bf16.mxu0 0
        %1558 = vmatpush1.bf16.msra.mxu0 0
        %1559 = vmatprep.subr.bf16.mxu0 0
        %1560 = vmatpush1.bf16.msra.mxu0 0
        %1561 = vmatprep.subr.bf16.mxu0 0
        %1562 = vmatpush1.bf16.msra.mxu0 0
        %1563 = vmatprep.mubr.bf16.mxu0 0
        %1564 = vmatmul.mubr.bf16.gmra.mrb[0].mxu0 %v1529
        %v1565 = vpop.f32.mrb[0].mxu0
        %v1566 = vadd.f32 0.0, %v1565
        %v1567 = vpop.f32.mrb[0].mxu0
        %v1568 = vpop.f32.mrb[0].mxu0
        %v1569 = vadd.f32 0.0, %v1568
        %v1570 = vpop.f32.mrb[0].mxu0
        %1571 = vdwg.mxu0
        %v1572 = vadd.f32 %v1347, %v1566
        %v1573 = vadd.f32 %v1348, %v1569
        %v1574 = vmul.f32 %v1572, %v1572
        %v1575 = vmul.f32 %v1573, %v1573
        %v1576 = vsel %vm508, %v1574, 0.0
        %1577 = vadd.xlane.f32.xlu0 %v1576
        %v1578 = vpop.xlane.xlu0 %1577
        %v1579 = vsel %vm508, %v1575, 0.0
        %1580 = vadd.xlane.f32.xlu0 %v1579
        %v1581 = vpop.xlane.xlu0 %1580
        %v1582 = vmul.f32 %v1578, %v515
        %v1583 = vmul.f32 %v1581, %v515
        %v1584 = vadd.f32 %v1582, 1e-05
        %v1585 = vadd.f32 %v1583, 1e-05
        %v1586 = vrsqrt.pop %v1584
        %v1587 = vrsqrt.pop %v1585
        %v1588 = vmul.f32 %v1572, %v1586
        %v1589 = vmul.f32 %v1573, %v1587
        %v1590 = vld [vmem:[#allocation14] sm:$0x1]
        %v1592 = vlaneseq
        %v1593 = vshrl.u32 %v1592, 7
        %v1594 = vsub.s32 0, %v1593
        %v1595 = vrot.slane %v1590, %v1594
        %v1597 = vmul.f32 %v1588, %v1595
        %v1598 = vmul.f32 %v1589, %v1595
        %v1599 = vpack.c.bf16 %v1598, %v1597
        %v1600 = vld [vmem:[#allocation16] sm:$0xff]
        %v1601 = vld [vmem:[#allocation16 + $0x8] sm:$0xff]
        %v1602 = vld [vmem:[#allocation16 + $0x10] sm:$0xff]
        %v1603 = vld [vmem:[#allocation16 + $0x18] sm:$0xff]
        %v1604 = vld [vmem:[#allocation16 + $0x20] sm:$0xff]
        %v1605 = vld [vmem:[#allocation16 + $0x28] sm:$0xff]
        %v1606 = vld [vmem:[#allocation16 + $0x30] sm:$0xff]
        %v1607 = vld [vmem:[#allocation16 + $0x38] sm:$0xff]
        %v1608 = vld [vmem:[#allocation16 + $0x40] sm:$0xff]
        %v1609 = vld [vmem:[#allocation16 + $0x48] sm:$0xff]
        %v1610 = vld [vmem:[#allocation16 + $0x50] sm:$0xff]
        %v1611 = vld [vmem:[#allocation16 + $0x58] sm:$0xff]
        %v1612 = vld [vmem:[#allocation16 + $0x60] sm:$0xff]
        %v1613 = vld [vmem:[#allocation16 + $0x68] sm:$0xff]
        %v1614 = vld [vmem:[#allocation16 + $0x70] sm:$0xff]
        %v1615 = vld [vmem:[#allocation16 + $0x78] sm:$0xff]
        %v1632 = vunpack.c.l.b16 %v1600
        %v1633 = vunpack.c.h.b16 %v1600
        %v1634 = vunpack.c.l.b16 %v1601
        %v1635 = vunpack.c.h.b16 %v1601
        %v1636 = vunpack.c.l.b16 %v1602
        %v1637 = vunpack.c.h.b16 %v1602
        %v1638 = vunpack.c.l.b16 %v1603
        %v1639 = vunpack.c.h.b16 %v1603
        %v1640 = vunpack.c.l.b16 %v1604
        %v1641 = vunpack.c.h.b16 %v1604
        %v1642 = vunpack.c.l.b16 %v1605
        %v1643 = vunpack.c.h.b16 %v1605
        %v1644 = vunpack.c.l.b16 %v1606
        %v1645 = vunpack.c.h.b16 %v1606
        %v1646 = vunpack.c.l.b16 %v1607
        %v1647 = vunpack.c.h.b16 %v1607
        %v1648 = vunpack.c.l.b16 %v1608
        %v1649 = vunpack.c.h.b16 %v1608
        %v1650 = vunpack.c.l.b16 %v1609
        %v1651 = vunpack.c.h.b16 %v1609
        %v1652 = vunpack.c.l.b16 %v1610
        %v1653 = vunpack.c.h.b16 %v1610
        %v1654 = vunpack.c.l.b16 %v1611
        %v1655 = vunpack.c.h.b16 %v1611
        %v1656 = vunpack.c.l.b16 %v1612
        %v1657 = vunpack.c.h.b16 %v1612
        %v1658 = vunpack.c.l.b16 %v1613
        %v1659 = vunpack.c.h.b16 %v1613
        %v1660 = vunpack.c.l.b16 %v1614
        %v1661 = vunpack.c.h.b16 %v1614
        %v1662 = vunpack.c.l.b16 %v1615
        %v1663 = vunpack.c.h.b16 %v1615
        %v1664 = vpack.c.b16 %v1636, %v1632
        %v1665 = vpack.c.b16 %v1637, %v1633
        %v1666 = vpack.c.b16 %v1638, %v1634
        %v1667 = vpack.c.b16 %v1639, %v1635
        %v1668 = vpack.c.b16 %v1644, %v1640
        %v1669 = vpack.c.b16 %v1645, %v1641
        %v1670 = vpack.c.b16 %v1646, %v1642
        %v1671 = vpack.c.b16 %v1647, %v1643
        %v1672 = vpack.c.b16 %v1652, %v1648
        %v1673 = vpack.c.b16 %v1653, %v1649
        %v1674 = vpack.c.b16 %v1654, %v1650
        %v1675 = vpack.c.b16 %v1655, %v1651
        %v1676 = vpack.c.b16 %v1660, %v1656
        %v1677 = vpack.c.b16 %v1661, %v1657
        %v1678 = vpack.c.b16 %v1662, %v1658
        %v1679 = vpack.c.b16 %v1663, %v1659
        %v1697 = vsel %vm508, %v1599, 0
        %1699 = vmatprep.subr.bf16.mxu0 %v1665
        %1700 = vmatpush1.bf16.msra.mxu0 %v1664
        %1701 = vmatprep.subr.bf16.mxu0 %v1669
        %1702 = vmatpush1.bf16.msra.mxu0 %v1668
        %1703 = vmatprep.subr.bf16.mxu0 %v1673
        %1704 = vmatpush1.bf16.msra.mxu0 %v1672
        %1705 = vmatprep.subr.bf16.mxu0 %v1677
        %1706 = vmatpush1.bf16.msra.mxu0 %v1676
        %1707 = vmatprep.subr.bf16.mxu0 0
        %1708 = vmatpush1.bf16.msra.mxu0 0
        %1709 = vmatprep.subr.bf16.mxu0 0
        %1710 = vmatpush1.bf16.msra.mxu0 0
        %1711 = vmatprep.subr.bf16.mxu0 0
        %1712 = vmatpush1.bf16.msra.mxu0 0
        %1713 = vmatprep.subr.bf16.mxu0 0
        %1714 = vmatpush1.bf16.msra.mxu0 0
        %1715 = vmatprep.subr.bf16.mxu0 0
        %1716 = vmatpush1.bf16.msra.mxu0 0
        %1717 = vmatprep.subr.bf16.mxu0 0
        %1718 = vmatpush1.bf16.msra.mxu0 0
        %1719 = vmatprep.subr.bf16.mxu0 0
        %1720 = vmatpush1.bf16.msra.mxu0 0
        %1721 = vmatprep.subr.bf16.mxu0 0
        %1722 = vmatpush1.bf16.msra.mxu0 0
        %1723 = vmatprep.subr.bf16.mxu0 0
        %1724 = vmatpush1.bf16.msra.mxu0 0
        %1725 = vmatprep.subr.bf16.mxu0 0
        %1726 = vmatpush1.bf16.msra.mxu0 0
        %1727 = vmatprep.subr.bf16.mxu0 0
        %1728 = vmatpush1.bf16.msra.mxu0 0
        %1729 = vmatprep.subr.bf16.mxu0 0
        %1730 = vmatpush1.bf16.msra.mxu0 0
        %1731 = vmatprep.mubr.bf16.mxu0 0
        %1732 = vmatmul.mubr.bf16.gmra.mrb[0].mxu0 %v1697
        %v1733 = vpop.f32.mrb[0].mxu0
        %v1734 = vadd.f32 0.0, %v1733
        %v1735 = vpop.f32.mrb[0].mxu0
        %v1736 = vadd.f32 0.0, %v1735
        %v1737 = vpop.f32.mrb[0].mxu0
        %v1738 = vadd.f32 0.0, %v1737
        %v1739 = vpop.f32.mrb[0].mxu0
        %v1740 = vadd.f32 0.0, %v1739
        %1741 = vdwg.mxu0
        %1742 = vmatprep.subr.bf16.mxu0 %v1667
        %1743 = vmatpush1.bf16.msra.mxu0 %v1666
        %1744 = vmatprep.subr.bf16.mxu0 %v1671
        %1745 = vmatpush1.bf16.msra.mxu0 %v1670
        %1746 = vmatprep.subr.bf16.mxu0 %v1675
        %1747 = vmatpush1.bf16.msra.mxu0 %v1674
        %1748 = vmatprep.subr.bf16.mxu0 %v1679
        %1749 = vmatpush1.bf16.msra.mxu0 %v1678
        %1750 = vmatprep.subr.bf16.mxu0 0
        %1751 = vmatpush1.bf16.msra.mxu0 0
        %1752 = vmatprep.subr.bf16.mxu0 0
        %1753 = vmatpush1.bf16.msra.mxu0 0
        %1754 = vmatprep.subr.bf16.mxu0 0
        %1755 = vmatpush1.bf16.msra.mxu0 0
        %1756 = vmatprep.subr.bf16.mxu0 0
        %1757 = vmatpush1.bf16.msra.mxu0 0
        %1758 = vmatprep.subr.bf16.mxu0 0
        %1759 = vmatpush1.bf16.msra.mxu0 0
        %1760 = vmatprep.subr.bf16.mxu0 0
        %1761 = vmatpush1.bf16.msra.mxu0 0
        %1762 = vmatprep.subr.bf16.mxu0 0
        %1763 = vmatpush1.bf16.msra.mxu0 0
        %1764 = vmatprep.subr.bf16.mxu0 0
        %1765 = vmatpush1.bf16.msra.mxu0 0
        %1766 = vmatprep.subr.bf16.mxu0 0
        %1767 = vmatpush1.bf16.msra.mxu0 0
        %1768 = vmatprep.subr.bf16.mxu0 0
        %1769 = vmatpush1.bf16.msra.mxu0 0
        %1770 = vmatprep.subr.bf16.mxu0 0
        %1771 = vmatpush1.bf16.msra.mxu0 0
        %1772 = vmatprep.subr.bf16.mxu0 0
        %1773 = vmatpush1.bf16.msra.mxu0 0
        %1774 = vmatprep.mubr.bf16.mxu0 0
        %1775 = vmatmul.mubr.bf16.gmra.mrb[0].mxu0 %v1697
        %v1776 = vpop.f32.mrb[0].mxu0
        %v1777 = vadd.f32 0.0, %v1776
        %v1778 = vpop.f32.mrb[0].mxu0
        %v1779 = vadd.f32 0.0, %v1778
        %v1780 = vpop.f32.mrb[0].mxu0
        %v1781 = vadd.f32 0.0, %v1780
        %v1782 = vpop.f32.mrb[0].mxu0
        %v1783 = vadd.f32 0.0, %v1782
        %1784 = vdwg.mxu0
        %v1785 = vxor.u32 %v1734, 2147483648
        %v1786 = vxor.u32 %v1736, 2147483648
        %v1787 = vxor.u32 %v1738, 2147483648
        %v1788 = vxor.u32 %v1740, 2147483648
        %v1789 = vmul.f32 %v1785, 1.442695
        %v1790 = vpow.pop %v1789
        %v1791 = vmul.f32 %v1786, 1.442695
        %v1792 = vpow.pop %v1791
        %v1793 = vmul.f32 %v1787, 1.442695
        %v1794 = vpow.pop %v1793
        %v1795 = vmul.f32 %v1788, 1.442695
        %v1796 = vpow.pop %v1795
        %v1797 = vadd.f32 %v1790, 1.0
        %v1798 = vadd.f32 %v1792, 1.0
        %v1799 = vadd.f32 %v1794, 1.0
        %v1800 = vadd.f32 %v1796, 1.0
        %v1801 = vrcp.pop %v1797
        %v1802 = vmul.f32 1.0, %v1801
        %v1803 = vrcp.pop %v1798
        %v1804 = vmul.f32 1.0, %v1803
        %v1805 = vrcp.pop %v1799
        %v1806 = vmul.f32 1.0, %v1805
        %v1807 = vrcp.pop %v1800
        %v1808 = vmul.f32 1.0, %v1807
        %v1809 = vmul.f32 %v1734, %v1802
        %v1810 = vmul.f32 %v1736, %v1804
        %v1811 = vmul.f32 %v1738, %v1806
        %v1812 = vmul.f32 %v1740, %v1808
        %v1813 = vmul.f32 %v1809, %v1777
        %v1814 = vmul.f32 %v1810, %v1779
        %v1815 = vmul.f32 %v1811, %v1781
        %v1816 = vmul.f32 %v1812, %v1783
        %v1817 = vpack.c.bf16 %v1815, %v1813
        %v1818 = vpack.c.bf16 %v1816, %v1814
        %v1819 = vld [vmem:[#allocation17] sm:$0xf]
        %v1820 = vld [vmem:[#allocation17 + $0x4] sm:$0xf]
        %v1821 = vld [vmem:[#allocation17 + $0x8] sm:$0xf]
        %v1822 = vld [vmem:[#allocation17 + $0xc] sm:$0xf]
        %v1823 = vld [vmem:[#allocation17 + $0x10] sm:$0xf]
        %v1824 = vld [vmem:[#allocation17 + $0x14] sm:$0xf]
        %v1825 = vld [vmem:[#allocation17 + $0x18] sm:$0xf]
        %v1826 = vld [vmem:[#allocation17 + $0x1c] sm:$0xf]
        %v1827 = vld [vmem:[#allocation17 + $0x20] sm:$0xf]
        %v1828 = vld [vmem:[#allocation17 + $0x24] sm:$0xf]
        %v1829 = vld [vmem:[#allocation17 + $0x28] sm:$0xf]
        %v1830 = vld [vmem:[#allocation17 + $0x2c] sm:$0xf]
        %v1831 = vld [vmem:[#allocation17 + $0x30] sm:$0xf]
        %v1832 = vld [vmem:[#allocation17 + $0x34] sm:$0xf]
        %v1833 = vld [vmem:[#allocation17 + $0x38] sm:$0xf]
        %v1834 = vld [vmem:[#allocation17 + $0x3c] sm:$0xf]
        %v1835 = vld [vmem:[#allocation17 + $0x40] sm:$0xf]
        %v1836 = vld [vmem:[#allocation17 + $0x44] sm:$0xf]
        %v1837 = vld [vmem:[#allocation17 + $0x48] sm:$0xf]
        %v1838 = vld [vmem:[#allocation17 + $0x4c] sm:$0xf]
        %v1839 = vld [vmem:[#allocation17 + $0x50] sm:$0xf]
        %v1840 = vld [vmem:[#allocation17 + $0x54] sm:$0xf]
        %v1841 = vld [vmem:[#allocation17 + $0x58] sm:$0xf]
        %v1842 = vld [vmem:[#allocation17 + $0x5c] sm:$0xf]
        %v1843 = vld [vmem:[#allocation17 + $0x60] sm:$0xf]
        %v1844 = vld [vmem:[#allocation17 + $0x64] sm:$0xf]
        %v1845 = vld [vmem:[#allocation17 + $0x68] sm:$0xf]
        %v1846 = vld [vmem:[#allocation17 + $0x6c] sm:$0xf]
        %v1847 = vld [vmem:[#allocation17 + $0x70] sm:$0xf]
        %v1848 = vld [vmem:[#allocation17 + $0x74] sm:$0xf]
        %v1849 = vld [vmem:[#allocation17 + $0x78] sm:$0xf]
        %v1850 = vld [vmem:[#allocation17 + $0x7c] sm:$0xf]
        %v1883 = vunpack.c.l.b16 %v1819
        %v1884 = vunpack.c.l.b16 %v1820
        %v1885 = vunpack.c.l.b16 %v1821
        %v1886 = vunpack.c.l.b16 %v1822
        %v1887 = vunpack.c.l.b16 %v1823
        %v1888 = vunpack.c.l.b16 %v1824
        %v1889 = vunpack.c.l.b16 %v1825
        %v1890 = vunpack.c.l.b16 %v1826
        %v1891 = vunpack.c.l.b16 %v1827
        %v1892 = vunpack.c.l.b16 %v1828
        %v1893 = vunpack.c.l.b16 %v1829
        %v1894 = vunpack.c.l.b16 %v1830
        %v1895 = vunpack.c.l.b16 %v1831
        %v1896 = vunpack.c.l.b16 %v1832
        %v1897 = vunpack.c.l.b16 %v1833
        %v1898 = vunpack.c.l.b16 %v1834
        %v1899 = vunpack.c.l.b16 %v1835
        %v1900 = vunpack.c.l.b16 %v1836
        %v1901 = vunpack.c.l.b16 %v1837
        %v1902 = vunpack.c.l.b16 %v1838
        %v1903 = vunpack.c.l.b16 %v1839
        %v1904 = vunpack.c.l.b16 %v1840
        %v1905 = vunpack.c.l.b16 %v1841
        %v1906 = vunpack.c.l.b16 %v1842
        %v1907 = vunpack.c.l.b16 %v1843
        %v1908 = vunpack.c.l.b16 %v1844
        %v1909 = vunpack.c.l.b16 %v1845
        %v1910 = vunpack.c.l.b16 %v1846
        %v1911 = vunpack.c.l.b16 %v1847
        %v1912 = vunpack.c.l.b16 %v1848
        %v1913 = vunpack.c.l.b16 %v1849
        %v1914 = vunpack.c.l.b16 %v1850
        %v1915 = vpack.c.b16 %v1884, %v1883
        %v1916 = vpack.c.b16 %v1886, %v1885
        %v1917 = vpack.c.b16 %v1888, %v1887
        %v1918 = vpack.c.b16 %v1890, %v1889
        %v1919 = vpack.c.b16 %v1892, %v1891
        %v1920 = vpack.c.b16 %v1894, %v1893
        %v1921 = vpack.c.b16 %v1896, %v1895
        %v1922 = vpack.c.b16 %v1898, %v1897
        %v1923 = vpack.c.b16 %v1900, %v1899
        %v1924 = vpack.c.b16 %v1902, %v1901
        %v1925 = vpack.c.b16 %v1904, %v1903
        %v1926 = vpack.c.b16 %v1906, %v1905
        %v1927 = vpack.c.b16 %v1908, %v1907
        %v1928 = vpack.c.b16 %v1910, %v1909
        %v1929 = vpack.c.b16 %v1912, %v1911
        %v1930 = vpack.c.b16 %v1914, %v1913
        %1947 = vmatprep.subr.bf16.mxu0 0
        %1948 = vmatpush1.bf16.msra.mxu0 %v1915
        %1949 = vmatprep.subr.bf16.mxu0 0
        %1950 = vmatpush1.bf16.msra.mxu0 %v1916
        %1951 = vmatprep.subr.bf16.mxu0 0
        %1952 = vmatpush1.bf16.msra.mxu0 %v1917
        %1953 = vmatprep.subr.bf16.mxu0 0
        %1954 = vmatpush1.bf16.msra.mxu0 %v1918
        %1955 = vmatprep.subr.bf16.mxu0 0
        %1956 = vmatpush1.bf16.msra.mxu0 %v1919
        %1957 = vmatprep.subr.bf16.mxu0 0
        %1958 = vmatpush1.bf16.msra.mxu0 %v1920
        %1959 = vmatprep.subr.bf16.mxu0 0
        %1960 = vmatpush1.bf16.msra.mxu0 %v1921
        %1961 = vmatprep.subr.bf16.mxu0 0
        %1962 = vmatpush1.bf16.msra.mxu0 %v1922
        %1963 = vmatprep.subr.bf16.mxu0 0
        %1964 = vmatpush1.bf16.msra.mxu0 %v1923
        %1965 = vmatprep.subr.bf16.mxu0 0
        %1966 = vmatpush1.bf16.msra.mxu0 %v1924
        %1967 = vmatprep.subr.bf16.mxu0 0
        %1968 = vmatpush1.bf16.msra.mxu0 %v1925
        %1969 = vmatprep.subr.bf16.mxu0 0
        %1970 = vmatpush1.bf16.msra.mxu0 %v1926
        %1971 = vmatprep.subr.bf16.mxu0 0
        %1972 = vmatpush1.bf16.msra.mxu0 %v1927
        %1973 = vmatprep.subr.bf16.mxu0 0
        %1974 = vmatpush1.bf16.msra.mxu0 %v1928
        %1975 = vmatprep.subr.bf16.mxu0 0
        %1976 = vmatpush1.bf16.msra.mxu0 %v1929
        %1977 = vmatprep.subr.bf16.mxu0 0
        %1978 = vmatpush1.bf16.msra.mxu0 %v1930
        %1979 = vmatprep.mubr.bf16.mxu0 %v1818
        %1980 = vmatmul.mubr.bf16.gmra.mrb[0].mxu0 %v1817
        %v1981 = vpop.f32.mrb[0].mxu0
        %v1982 = vadd.f32 0.0, %v1981
        %v1983 = vpop.f32.mrb[0].mxu0
        %v1984 = vpop.f32.mrb[0].mxu0
        %v1985 = vadd.f32 0.0, %v1984
        %v1986 = vpop.f32.mrb[0].mxu0
        %1987 = vdwg.mxu0
        %v1988 = vadd.f32 %v1572, %v1982
        %v1989 = vadd.f32 %v1573, %v1985
        %1990 = vst.msk [vmem:[%s502] sm:$0xff] %vm508, %v1988
        %1991 = vst.msk [vmem:[%s502 + $0x8] sm:$0xff] %vm508, %v1989
        %s1992 = sand.u32 %s255, 1
        %s1993 = scalar_lea.sflag [#allocation4], %s1992
        %s1994 = sand.u32 %s255, 1
        %s1995 = smul.addr %s1994, 16
        %s1996 = scalar_lea.vmem [#allocation19], %s1995
        // Predicated region
        $region101: #{tpu_custom_call.1} parent=59 // pred_check
          %p1997 = pneg %p265
        $region102: #{tpu_custom_call.1} parent=59 // pred_check_branch
          %1999 = sbr.rel (%p1997) target = $region104
        $region103: #{tpu_custom_call.1} parent=59 // pred_region
          %s2001 = ssub.s32 256, 256
          %2002 = vsyncadd %s1993, %s2001
          %s2003 = smul.addr %s32, 2
          %s2004 = smul.addr %s2003, 128
          %s2005 = scalar_lea.hbm %s10, %s2004
          %s2006 = sshll.u32 %s1996, 4
          %s2007 = int_to_ptr.vmem [resolvable:$true] %s2006
          %2012 = dma.vmem_to_hbm [thread:$0]  %s2007, 256, %s2005, %s1993, 128, 128, 8
        $region104: #{tpu_custom_call.1} parent=59 // pred_fallthru
          _
      $region60: #{tpu_custom_call.1} parent=5 // pred_fallthru
        _
      %p2013 = scmp.le.s32.totalorder 2, %s27
      // Predicated region
      $region105: #{tpu_custom_call.1} parent=5 // pred_check
        %p2014 = pneg %p2013
      $region106: #{tpu_custom_call.1} parent=5 // pred_check_branch
        %2016 = sbr.rel (%p2014) target = $region108
      $region107: #{tpu_custom_call.1} parent=5 // pred_region
        %s2017 = ssub.s32 %s27, 2
        // Predicated region
        $region109: #{tpu_custom_call.1} parent=107 // pred_check
          %p2018 = pneg %p271
        $region110: #{tpu_custom_call.1} parent=107 // pred_check_branch
          %2020 = sbr.rel (%p2018) target = $region112
        $region111: #{tpu_custom_call.1} parent=107 // pred_region
          %s2021 = sand.u32 %s256, 1
          %s2022 = scalar_lea.sflag [#allocation4], %s2021
          %s2023 = sand.u32 %s256, 1
          %s2024 = smul.addr %s2023, 16
          %s2025 = scalar_lea.vmem [#allocation19], %s2024
          %2026 = dma.done %s2022, 256
        $region112: #{tpu_custom_call.1} parent=107 // pred_fallthru
          _
      $region108: #{tpu_custom_call.1} parent=5 // pred_fallthru
        _
    $region6: #{tpu_custom_call.1} parent=1 // loop_footer
      %s31 = sadd.s32 1, %s27
    $region7: #{tpu_custom_call.1} parent=1 // loop_footer_branch
      %26 = sbr.rel target = $region3
    $region8: #{tpu_custom_call.1} parent=1 // loop_exit
      _
    %2027 = vsyncpa [#allocation3], 1
    %s2028 = scalar_lea.sflag [#allocation3], 1
    %2029 = vsyncpa %s2028, 1
    %2030 = vsyncpa [#allocation6], 1
    %2031 = vsyncpa [#allocation9], 1
    %2032 = vsyncpa [#allocation12], 1
    %2033 = vsyncpa [#allocation15], 1
    %2034 = vsyncpa [#allocation18], 1
    %2035 = vsyncpa [#allocation4], 1
    %s2036 = scalar_lea.sflag [#allocation4], 1
    %2037 = vsyncpa %s2036, 1

</llo_original>
